<compile_context>
chip_gen: v5e
topology: v5e:2x2
jax: 0.10.0
libtpu: 0.0.40
codegen_flags: <defaults>
</compile_context>

<pallas_src>
import functools

import jax
import jax.numpy as jnp
from jax.experimental import pallas as pl
from jax.experimental.pallas import tpu as pltpu


def _round_up(x, m):
    return (x + m - 1) // m * m


def _tiling(n):
    """Pick (n_pad, tm, tk): choose large tiles first, then pad N up to them."""
    n128 = _round_up(n, 128)
    if n128 <= 1024:
        # Small graph: whole row dim is a single K block; split the row blocks
        # in two when possible so "parallel" can feed both v7x TensorCores.
        tk = n128
        tm = n128 // 2 if n128 >= 256 else n128
        return n128, tm, tk
    # Large graph: 512 x 1024 bf16 A tiles (1 MiB each); tm | tk | n_pad.
    tm, tk = 512, 1024
    return _round_up(n128, tk), tm, tk


def _vmem_limit(n_pad, fin_pad, fout_pad, tm, tk):
    """Derive an explicit VMEM budget (headroom included, capped for v7x)."""
    a = 3 * tm * tk * 2                       # adjacency tiles (bf16, <=3 bufs)
    x = 2 * n_pad * fin_pad * 2               # resident X window (bf16)
    w = 2 * 2 * fin_pad * fout_pad * 2        # W_l, W_r (bf16)
    inv = 2 * tm * 128 * 4                    # inv_deg tile (lane-padded f32)
    b = 2 * 8 * fout_pad * 4                  # bias tile (sublane-padded f32)
    o = 2 * tm * fout_pad * 4                 # output tile (f32 worst case)
    acc = tm * fin_pad * 4                    # accumulator scratch (f32)
    need = a + x + w + inv + b + o + acc
    return int(min(max(2 * need, 32 * 1024 * 1024), 56 * 1024 * 1024))


# ---------------------------------------------------------------------------
# Kernel: one SAGEConv layer.
#   aggregation: binary A_tile @ X[k-block] accumulated in f32 (MXU),
#   finalize:    f32 mean normalization (1/deg), two projections
#                (aggr @ W_l + x_root @ W_r + b), layer-specific activation.
# Grid = (row blocks of A [parallel], K blocks of A [arbitrary reduction]).
# ---------------------------------------------------------------------------
def _sage_layer_kernel(finalize_fn, tm, tk,
                       a_ref,     # (TM, TK)        bf16  binary adjacency tile
                       x_ref,     # (N_pad, Fin)    bf16  resident features
                       inv_ref,   # (TM, 1)         f32   1/deg for row block
                       wl_ref,    # (Fin, Fout)     bf16  W_l
                       wr_ref,    # (Fin, Fout)     bf16  W_r
                       b_ref,     # (1, Fout)       f32   bias
                       o_ref,     # (TM, Fout)
                       acc_ref):  # (TM, Fin)       f32   aggregation accum
    i = pl.program_id(0)
    k = pl.program_id(1)

    @pl.when(k == 0)
    def _():
        acc_ref[...] = jnp.zeros_like(acc_ref)

    # Neighbor-sum partial: A_tile @ X[k block], f32 accumulation on the MXU.
    xk = x_ref[pl.ds(pl.multiple_of(k * tk, 128), tk), :]
    acc_ref[...] += jnp.dot(a_ref[...], xk, preferred_element_type=jnp.float32)

    @pl.when(k == pl.num_programs(1) - 1)
    def _():
        # Mean normalization in f32, then lin_l / lin_r as two MXU matmuls
        # (no intermediate concatenate copy).
        aggr = (acc_ref[...] * inv_ref[...]).astype(jnp.bfloat16)
        xi = x_ref[pl.ds(pl.multiple_of(i * tm, 8), tm), :]
        out = (jnp.dot(aggr, wl_ref[...], preferred_element_type=jnp.float32)
               + jnp.dot(xi, wr_ref[...], preferred_element_type=jnp.float32)
               + b_ref[...])
        o_ref[...] = finalize_fn(out).astype(o_ref.dtype)


def _relu_finalize(z):
    # F.relu; F.dropout(training=False) is the identity.
    return jnp.maximum(z, 0.0)


def _make_split_log_softmax(edge_sf_num, classes):
    """Fused log_softmax over lanes [0, edge_sf_num) and [edge_sf_num, classes).

    Per-lane selection of its own region's max / lse so only a single exp pass
    runs; padded lanes (>= classes) are zeroed.
    """
    def finalize(z):
        tm, c_pad = z.shape
        lane = jax.lax.broadcasted_iota(jnp.int32, (tm, c_pad), 1)
        is_sf = lane < edge_sf_num
        is_ptx = (lane >= edge_sf_num) & (lane < classes)
        valid = is_sf | is_ptx
        neg = jnp.float32(-1e30)
        m_sf = jnp.max(jnp.where(is_sf, z, neg), axis=1, keepdims=True)
        m_ptx = jnp.max(jnp.where(is_ptx, z, neg), axis=1, keepdims=True)
        m = jnp.where(is_sf, m_sf, m_ptx)            # each lane's region max
        e = jnp.where(valid, jnp.exp(z - m), 0.0)    # single exp pass
        s_sf = jnp.sum(jnp.where(is_sf, e, 0.0), axis=1, keepdims=True)
        s_ptx = jnp.sum(jnp.where(is_ptx, e, 0.0), axis=1, keepdims=True)
        lse = jnp.where(is_sf, jnp.log(s_sf), jnp.log(s_ptx))
        return jnp.where(valid, z - m - lse, 0.0)
    return finalize


def _sage_layer(adj, feats, inv_deg, w_l, w_r, bias, finalize_fn, out_dtype,
                n_pad, fin_pad, fout_pad, tm, tk):
    grid = (n_pad // tm, n_pad // tk)
    kernel = functools.partial(_sage_layer_kernel, finalize_fn, tm, tk)

    # Deepen the adjacency stream pipeline only when there are enough steps.
    if grid[0] * grid[1] >= 3:
        a_spec = pl.BlockSpec((tm, tk), lambda i, k: (i, k),
                              pipeline_mode=pl.Buffered(3))
    else:
        a_spec = pl.BlockSpec((tm, tk), lambda i, k: (i, k))

    return pl.pallas_call(
        kernel,
        out_shape=jax.ShapeDtypeStruct((n_pad, fout_pad), out_dtype),
        grid_spec=pltpu.PrefetchScalarGridSpec(
            num_scalar_prefetch=0,
            grid=grid,
            in_specs=[
                a_spec,                                               # A tile
                pl.BlockSpec((n_pad, fin_pad), lambda i, k: (0, 0)),  # X (resident)
                pl.BlockSpec((tm, 1), lambda i, k: (i, 0)),           # 1/deg rows
                pl.BlockSpec((fin_pad, fout_pad), lambda i, k: (0, 0)),  # W_l
                pl.BlockSpec((fin_pad, fout_pad), lambda i, k: (0, 0)),  # W_r
                pl.BlockSpec((1, fout_pad), lambda i, k: (0, 0)),        # bias
            ],
            out_specs=pl.BlockSpec((tm, fout_pad), lambda i, k: (i, 0)),
            scratch_shapes=[pltpu.VMEM((tm, fin_pad), jnp.float32)],
        ),
        compiler_params=pltpu.CompilerParams(
            dimension_semantics=("parallel", "arbitrary"),
            vmem_limit_bytes=_vmem_limit(n_pad, fin_pad, fout_pad, tm, tk),
        ),
    )(adj, feats, inv_deg, w_l, w_r, bias)


def _pad2d(a, rows, cols, dtype=None):
    out = jnp.zeros((rows, cols), a.dtype).at[:a.shape[0], :a.shape[1]].set(a)
    return out.astype(dtype) if dtype is not None else out


def _build_adjacency(edge_index, n_pad):
    """Binary (edge-count) bf16 adjacency + f32 per-row 1/deg.

    Callers running many forward passes on the same graph should cache the
    result instead of rebuilding the O(N^2) operand each call.
    """
    src, dst = edge_index[0], edge_index[1]
    adj_f32 = jnp.zeros((n_pad, n_pad), jnp.float32).at[dst, src].add(1.0)
    deg = jnp.sum(adj_f32, axis=1, keepdims=True)
    inv_deg = 1.0 / jnp.maximum(deg, 1.0)               # (n_pad, 1) f32
    return adj_f32.astype(jnp.bfloat16), inv_deg


def graphsage_forward(x, edge_index, params, edge_sf_num):
    """x: (N, feature) f32; edge_index: (2, E) int32 [src; dst]."""
    n, feature = x.shape
    hidden = params["w1l"].shape[1]
    classes = params["w2l"].shape[1]
    assert 1 <= edge_sf_num < classes

    n_pad, tm, tk = _tiling(n)
    f_pad = _round_up(feature, 128)
    h_pad = _round_up(hidden, 128)
    c_pad = _round_up(classes, 128)

    adj, inv_deg = _build_adjacency(edge_index, n_pad)
    xp = _pad2d(x, n_pad, f_pad, jnp.bfloat16)

    w1l = _pad2d(params["w1l"], f_pad, h_pad, jnp.bfloat16)
    w1r = _pad2d(params["w1r"], f_pad, h_pad, jnp.bfloat16)
    b1 = _pad2d(params["b1"], 1, h_pad)
    w2l = _pad2d(params["w2l"], h_pad, c_pad, jnp.bfloat16)
    w2r = _pad2d(params["w2r"], h_pad, c_pad, jnp.bfloat16)
    b2 = _pad2d(params["b2"], 1, c_pad)

    # Layer 1: SAGEConv + ReLU (+ eval-mode dropout == identity); bf16 output
    # feeds the layer-2 A-matmul on the MXU bf16 path directly.
    h = _sage_layer(adj, xp, inv_deg, w1l, w1r, b1, _relu_finalize,
                    jnp.bfloat16, n_pad, f_pad, h_pad, tm, tk)

    # Layer 2: SAGEConv + split log_softmax into one lane-dense 128-wide slab.
    out = _sage_layer(adj, h, inv_deg, w2l, w2r, b2,
                      _make_split_log_softmax(edge_sf_num, classes),
                      jnp.float32, n_pad, h_pad, c_pad, tm, tk)

    return out[:n, :edge_sf_num], out[:n, edge_sf_num:classes]


def init_params(key, feature, hidden, classes):
    ks = jax.random.split(key, 6)
    scale1 = 1.0 / jnp.sqrt(feature)
    scale2 = 1.0 / jnp.sqrt(hidden)
    # Weights stored pre-transposed as (in, out) so the kernel does X @ W.
    return {
        "w1l": jax.random.uniform(ks[0], (feature, hidden), jnp.float32, -scale1, scale1),
        "w1r": jax.random.uniform(ks[1], (feature, hidden), jnp.float32, -scale1, scale1),
        "b1": jax.random.uniform(ks[2], (1, hidden), jnp.float32, -scale1, scale1),
        "w2l": jax.random.uniform(ks[3], (hidden, classes), jnp.float32, -scale2, scale2),
        "w2r": jax.random.uniform(ks[4], (hidden, classes), jnp.float32, -scale2, scale2),
        "b2": jax.random.uniform(ks[5], (1, classes), jnp.float32, -scale2, scale2),
    }


def _reference(x, edge_index, params, edge_sf_num):
    """Pure-JAX f32 reference (PyG SAGEConv mean semantics)."""
    n = x.shape[0]
    src, dst = edge_index[0], edge_index[1]
    adj = jnp.zeros((n, n), jnp.float32).at[dst, src].add(1.0)
    adj = adj / jnp.maximum(jnp.sum(adj, axis=1, keepdims=True), 1.0)
    h = jnp.maximum(adj @ x @ params["w1l"] + x @ params["w1r"] + params["b1"], 0.0)
    out = adj @ h @ params["w2l"] + h @ params["w2r"] + params["b2"]

    def lsm(z):
        m = jnp.max(z, axis=1, keepdims=True)
        return z - m - jnp.log(jnp.sum(jnp.exp(z - m), axis=1, keepdims=True))

    return lsm(out[:, :edge_sf_num]), lsm(out[:, edge_sf_num:])


if __name__ == "__main__":
    feature, hidden, classes = 8, 32, 10
    num_nodes, num_edges = 300, 1500   # pads to 384 -> grid (2, 1): two row blocks
    edge_sf_num = 6

    key = jax.random.PRNGKey(0)
    kx, ke, kp = jax.random.split(key, 3)

    x = jax.random.normal(kx, (num_nodes, feature), jnp.float32)
    edge_index = jax.random.randint(ke, (2, num_edges), 0, num_nodes, jnp.int32)
    params = init_params(kp, feature, hidden, classes)

    x_sf, x_ptx = graphsage_forward(x, edge_index, params, edge_sf_num)
    jax.block_until_ready((x_sf, x_ptx))

    assert x_sf.shape == (num_nodes, edge_sf_num)
    assert x_ptx.shape == (num_nodes, classes - edge_sf_num)
    assert bool(jnp.all(jnp.isfinite(x_sf))) and bool(jnp.all(jnp.isfinite(x_ptx)))
    # log_softmax rows must sum to 1 in probability space.
    assert bool(jnp.allclose(jnp.sum(jnp.exp(x_sf), axis=1), 1.0, atol=1e-4))
    assert bool(jnp.allclose(jnp.sum(jnp.exp(x_ptx), axis=1), 1.0, atol=1e-4))

    # Numerical check vs the f32 reference. Normalization is now f32 inside the
    # kernel (binary A), so the tolerance is tightened vs the bf16-A version;
    # remaining error is bf16 features/weights/intermediates.
    ref_sf, ref_ptx = _reference(x, edge_index, params, edge_sf_num)
    assert bool(jnp.allclose(x_sf, ref_sf, atol=0.1))
    assert bool(jnp.allclose(x_ptx, ref_ptx, atol=0.1))

    print("KERNEL_OK")
</pallas_src>

<mosaic_0001>
module attributes {stable_mosaic.version = 11 : i64} {
  func.func @_sage_layer_kernel(%arg0: i32, %arg1: i32, %arg2: memref<192x384xbf16, #tpu.memory_space<vmem>>, %arg3: memref<384x128xbf16, #tpu.memory_space<vmem>>, %arg4: memref<192x1xf32, #tpu.memory_space<vmem>>, %arg5: memref<128x128xbf16, #tpu.memory_space<vmem>>, %arg6: memref<128x128xbf16, #tpu.memory_space<vmem>>, %arg7: memref<1x128xf32, #tpu.memory_space<vmem>>, %arg8: memref<192x128xbf16, #tpu.memory_space<vmem>>, %arg9: memref<192x128xf32, #tpu.memory_space<vmem>>) attributes {dimension_semantics = [#tpu.dimension_semantics<parallel>, #tpu.dimension_semantics<arbitrary>], iteration_bounds = array<i64: 2, 1>, scalar_prefetch = 0 : i64, scratch_operands = 1 : i64, tpu.core_type = #tpu.core_type<tc>, window_params = [{transform_indices = @transform_0, window_bounds = array<i64: 192, 384>}, {pipeline_mode = #tpu.pipeline_mode<synchronous>, transform_indices = @transform_1, window_bounds = array<i64: 384, 128>}, {transform_indices = @transform_2, window_bounds = array<i64: 192, 1>}, {pipeline_mode = #tpu.pipeline_mode<synchronous>, transform_indices = @transform_3, window_bounds = array<i64: 128, 128>}, {pipeline_mode = #tpu.pipeline_mode<synchronous>, transform_indices = @transform_4, window_bounds = array<i64: 128, 128>}, {pipeline_mode = #tpu.pipeline_mode<synchronous>, transform_indices = @transform_5, window_bounds = array<i64: 1, 128>}, {transform_indices = @transform_6, window_bounds = array<i64: 192, 128>}]} {
    %c0_i32 = arith.constant 0 : i32
    %0 = arith.cmpi eq, %arg1, %c0_i32 : i32
    %1 = arith.extui %0 : i1 to i32
    %c0_i32_0 = arith.constant 0 : i32
    %2 = arith.cmpi ne, %1, %c0_i32_0 : i32
    scf.if %2 {
      %cst_9 = arith.constant 0.000000e+00 : f32
      %15 = vector.broadcast %cst_9 : f32 to vector<192x128xf32>
      %c0_10 = arith.constant 0 : index
      %c0_11 = arith.constant 0 : index
      %16 = vector.load %arg9[%c0_10, %c0_11] : memref<192x128xf32, #tpu.memory_space<vmem>>, vector<192x128xf32>
      tpu.vector_store %arg9[%c0_10, %c0_11], %15 {strides = array<i32>} : memref<192x128xf32, #tpu.memory_space<vmem>>, vector<192x128xf32>,
    } else {
    }
    %c384_i32 = arith.constant 384 : i32
    %3 = arith.muli %arg1, %c384_i32 : i32
    %4 = tpu.assume_multiple %3, 128 : i32
    %5 = arith.index_cast %4 : i32 to index
    %c0 = arith.constant 0 : index
    %6 = vector.load %arg3[%5, %c0] : memref<384x128xbf16, #tpu.memory_space<vmem>>, vector<384x128xbf16>
    %c0_1 = arith.constant 0 : index
    %c0_2 = arith.constant 0 : index
    %7 = vector.load %arg9[%c0_1, %c0_2] : memref<192x128xf32, #tpu.memory_space<vmem>>, vector<192x128xf32>
    %c0_3 = arith.constant 0 : index
    %c0_4 = arith.constant 0 : index
    %8 = vector.load %arg2[%c0_3, %c0_4] : memref<192x384xbf16, #tpu.memory_space<vmem>>, vector<192x384xbf16>
    %cst = arith.constant dense<0.000000e+00> : vector<192x128xf32>
    %9 = tpu.matmul %8, %6, %cst {dimension_numbers = #tpu.dot_dimension_numbers<[1], [0], [0], [1], [0, 0, 1, 1], [], []>} : vector<192x384xbf16>, vector<384x128xbf16>, vector<192x128xf32> -> vector<192x128xf32>
    %10 = arith.addf %7, %9 : vector<192x128xf32>
    %c0_5 = arith.constant 0 : index
    %c0_6 = arith.constant 0 : index
    %11 = vector.load %arg9[%c0_5, %c0_6] : memref<192x128xf32, #tpu.memory_space<vmem>>, vector<192x128xf32>
    tpu.vector_store %arg9[%c0_5, %c0_6], %10 {strides = array<i32>} : memref<192x128xf32, #tpu.memory_space<vmem>>, vector<192x128xf32>,
    %c0_i32_7 = arith.constant 0 : i32
    %12 = arith.cmpi eq, %arg1, %c0_i32_7 : i32
    %13 = arith.extui %12 : i1 to i32
    %c0_i32_8 = arith.constant 0 : i32
    %14 = arith.cmpi ne, %13, %c0_i32_8 : i32
    scf.if %14 {
      %c0_9 = arith.constant 0 : index
      %c0_10 = arith.constant 0 : index
      %15 = vector.load %arg9[%c0_9, %c0_10] : memref<192x128xf32, #tpu.memory_space<vmem>>, vector<192x128xf32>
      %c0_11 = arith.constant 0 : index
      %c0_12 = arith.constant 0 : index
      %16 = vector.load %arg4[%c0_11, %c0_12] : memref<192x1xf32, #tpu.memory_space<vmem>>, vector<192x1xf32>
      %17 = vector.broadcast %16 : vector<192x1xf32> to vector<192x128xf32>
      %18 = arith.mulf %15, %17 : vector<192x128xf32>
      %19 = arith.truncf %18 : vector<192x128xf32> to vector<192x128xbf16>
      %c192_i32 = arith.constant 192 : i32
      %20 = arith.muli %arg0, %c192_i32 : i32
      %21 = tpu.assume_multiple %20, 8 : i32
      %22 = arith.index_cast %21 : i32 to index
      %c0_13 = arith.constant 0 : index
      %23 = vector.load %arg3[%22, %c0_13] : memref<384x128xbf16, #tpu.memory_space<vmem>>, vector<192x128xbf16>
      %c0_14 = arith.constant 0 : index
      %c0_15 = arith.constant 0 : index
      %24 = vector.load %arg5[%c0_14, %c0_15] : memref<128x128xbf16, #tpu.memory_space<vmem>>, vector<128x128xbf16>
      %cst_16 = arith.constant dense<0.000000e+00> : vector<192x128xf32>
      %25 = tpu.matmul %19, %24, %cst_16 {dimension_numbers = #tpu.dot_dimension_numbers<[1], [0], [0], [1], [0, 0, 1, 1], [], []>} : vector<192x128xbf16>, vector<128x128xbf16>, vector<192x128xf32> -> vector<192x128xf32>
      %c0_17 = arith.constant 0 : index
      %c0_18 = arith.constant 0 : index
      %26 = vector.load %arg6[%c0_17, %c0_18] : memref<128x128xbf16, #tpu.memory_space<vmem>>, vector<128x128xbf16>
      %cst_19 = arith.constant dense<0.000000e+00> : vector<192x128xf32>
      %27 = tpu.matmul %23, %26, %cst_19 {dimension_numbers = #tpu.dot_dimension_numbers<[1], [0], [0], [1], [0, 0, 1, 1], [], []>} : vector<192x128xbf16>, vector<128x128xbf16>, vector<192x128xf32> -> vector<192x128xf32>
      %28 = arith.addf %25, %27 : vector<192x128xf32>
      %c0_20 = arith.constant 0 : index
      %c0_21 = arith.constant 0 : index
      %29 = vector.load %arg7[%c0_20, %c0_21] : memref<1x128xf32, #tpu.memory_space<vmem>>, vector<1x128xf32>
      %30 = vector.broadcast %29 : vector<1x128xf32> to vector<192x128xf32>
      %31 = arith.addf %28, %30 : vector<192x128xf32>
      %cst_22 = arith.constant 0.000000e+00 : f32
      %32 = vector.broadcast %cst_22 : f32 to vector<192x128xf32>
      %33 = arith.maximumf %31, %32 : vector<192x128xf32>
      %34 = arith.truncf %33 : vector<192x128xf32> to vector<192x128xbf16>
      %c0_23 = arith.constant 0 : index
      %c0_24 = arith.constant 0 : index
      %35 = vector.load %arg8[%c0_23, %c0_24] : memref<192x128xbf16, #tpu.memory_space<vmem>>, vector<192x128xbf16>
      tpu.vector_store %arg8[%c0_23, %c0_24], %34 {strides = array<i32>} : memref<192x128xbf16, #tpu.memory_space<vmem>>, vector<192x128xbf16>,
    } else {
    }
    return
  }
  func.func @transform_0(%arg0: i32, %arg1: i32) -> (i32, i32) {
    %c0_i32 = arith.constant 0 : i32
    return %arg0, %arg1 : i32, i32
  }
  func.func @transform_1(%arg0: i32, %arg1: i32) -> (i32, i32) {
    %c0_i32 = arith.constant 0 : i32
    %c0_i32_0 = arith.constant 0 : i32
    %c0_i32_1 = arith.constant 0 : i32
    return %c0_i32, %c0_i32_0 : i32, i32
  }
  func.func @transform_2(%arg0: i32, %arg1: i32) -> (i32, i32) {
    %c0_i32 = arith.constant 0 : i32
    %c0_i32_0 = arith.constant 0 : i32
    return %arg0, %c0_i32 : i32, i32
  }
  func.func @transform_3(%arg0: i32, %arg1: i32) -> (i32, i32) {
    %c0_i32 = arith.constant 0 : i32
    %c0_i32_0 = arith.constant 0 : i32
    %c0_i32_1 = arith.constant 0 : i32
    return %c0_i32, %c0_i32_0 : i32, i32
  }
  func.func @transform_4(%arg0: i32, %arg1: i32) -> (i32, i32) {
    %c0_i32 = arith.constant 0 : i32
    %c0_i32_0 = arith.constant 0 : i32
    %c0_i32_1 = arith.constant 0 : i32
    return %c0_i32, %c0_i32_0 : i32, i32
  }
  func.func @transform_5(%arg0: i32, %arg1: i32) -> (i32, i32) {
    %c0_i32 = arith.constant 0 : i32
    %c0_i32_0 = arith.constant 0 : i32
    %c0_i32_1 = arith.constant 0 : i32
    return %c0_i32, %c0_i32_0 : i32, i32
  }
  func.func @transform_6(%arg0: i32, %arg1: i32) -> (i32, i32) {
    %c0_i32 = arith.constant 0 : i32
    %c0_i32_0 = arith.constant 0 : i32
    return %arg0, %c0_i32 : i32, i32
  }
}

</mosaic_0001>

<llo_original>
// kernel: tpu_custom_call.1
$region0: #{tpu_custom_call.1}
  #allocation0 [shape = 'u32[]', space=smem, size = 0x4, offset = 0x4, fixed_abs, tag = 'smem constant byte address 0x4 - core index']
  #allocation1 [shape = 'u32[72,128]{1,0:T(1,128)}', space=vmem, size = 0x9000, scoped, tag = 'internal scratch']
  #allocation2 [shape = 'f32[192,128]{1,0:T(8,128)}', space=vmem, size = 0x18000, scoped, tag = 'scratch operand']
  %s0 = inlined_call_operand.hbm [shape: bf16[384,384], index: 0, kind: input, shape index: {}]
  %s1 = inlined_call_operand.vmem [shape: bf16[384,128], index: 1, kind: input, shape index: {}]
  %s2 = inlined_call_operand.vmem [shape: f32[384,1], index: 2, kind: input, shape index: {}]
  %s3 = inlined_call_operand.vmem [shape: bf16[128,128], index: 3, kind: input, shape index: {}]
  %s4 = inlined_call_operand.vmem [shape: bf16[128,128], index: 4, kind: input, shape index: {}]
  %s5 = inlined_call_operand.vmem [shape: f32[1,128], index: 5, kind: input, shape index: {}]
  %s6 = inlined_call_operand.hbm [shape: bf16[384,128], index: 6, kind: output, shape index: {}]
  %s7 = sld [smem:[#allocation0]]
  $region69: #{tpu_custom_call.1} parent=0
    _
  %s9 = ssub.s32 1, %s7
  %s10 = scalar_select 0, %s9, %s7
  $region1: #{tpu_custom_call.1} parent=0
    #allocation3 [shape = 'u8[294912]{0}', space=vmem, size = 0x48000, scoped, tag = 'input window, operand 0']
    #allocation4 [shape = 's32[2]{0}', space=sflag, size = 0x8, scoped, tag = 'scoped memory for tpu_custom_call.1']
    #allocation5 [shape = 's32[2]{0}', space=sflag, size = 0x8, scoped, tag = 'scoped memory for tpu_custom_call.1']
    #allocation6 [shape = 'u8[98304]{0}', space=vmem, size = 0x18000, scoped, tag = 'output window, operand 0']
    %11 = vsyncpa [#allocation4], 0
    %s12 = scalar_lea.sflag [#allocation4], 1
    %13 = vsyncpa %s12, 0
    %14 = vsyncpa [#allocation5], 0
    %s15 = scalar_lea.sflag [#allocation5], 1
    %16 = vsyncpa %s15, 0
    loop: start=0, step=1, limit=4
    $region2: #{tpu_custom_call.1} parent=1 // loop_pre_header
      _
    $region3: #{tpu_custom_call.1} parent=1 // loop_header
      %s18 = sphi 0, %s22
      %p19 = scmp.ge.s32.totalorder %s18, 4
      %s25 = sphi 0, %s37
      %s26 = sphi 0, %s33
      %s27 = sphi 0, %s25
      %s28 = sphi 0, %s26
      %s29 = sphi 0, %s27
      %s30 = sphi 0, %s28
      %s42 = sphi 0, %s44
      %s45 = sphi 0, %s42
      %s46 = sphi 0, %s45
      %s62 = sphi 0, %s46
      %s66 = sphi 0, %s66
      %s68 = sphi 0, %s66
      %s69 = sphi 0, %s68
      %s83 = sphi 0, %s69
      %s89 = sphi 0, %s91
      %s92 = sphi 0, %s89
      %s93 = sphi 0, %s92
      %s109 = sphi 0, %s93
      %s113 = sphi 0, %s113
      %s115 = sphi 0, %s113
      %s116 = sphi 0, %s115
      %s130 = sphi 0, %s116
      %s134 = sphi 0, %s134
      %s136 = sphi 0, %s134
      %s137 = sphi 0, %s136
      %s151 = sphi 0, %s137
      %s155 = sphi 0, %s155
      %s157 = sphi 0, %s155
      %s158 = sphi 0, %s157
      %s172 = sphi 0, %s158
      %s178 = sphi 0, %s180
      %s181 = sphi 0, %s178
      %s182 = sphi 0, %s181
      %s198 = sphi 0, %s182
    $region4: #{tpu_custom_call.1} parent=1 // loop_header_branch
      %21 = sbr.rel (%p19) target = $region8
    $region5: #{tpu_custom_call.1} parent=1 // loop_body
      %s23 = ssub.s32 %s18, 1
      %s24 = ssub.s32 %s18, 2
      %s31 = sadd.s32 1, %s26
      %p32 = scmp.ge.s32.totalorder %s31, 1
      %s33 = scalar_select %p32, 0, %s31
      %s34 = sadd.s32 1, %s25
      %s35 = scalar_select %p32, %s34, %s25
      %p36 = scmp.ge.s32.totalorder %s35, 2
      %s37 = scalar_select %p36, 0, %s35
      %s38 = ssub.s32 %s25, %s37
      %s39 = ssub.s32 %s26, %s33
      %s40 = sor.u32 %s38, %s39
      %p41 = scmp.eq.s32.totalorder %s40, 0
      %s43 = sadd.s32 %s42, 1
      %s44 = scalar_select %p41, %s42, %s43
      %p47 = pneg %p41
      %p48 = scmp.eq.s32.totalorder %s18, 1
      %p49 = por %p47, %p48
      %p50 = scmp.ne.s32.totalorder %s42, %s45
      %p51 = scmp.eq.s32.totalorder %s18, 0
      %p52 = por %p50, %p51
      %p53 = scmp.ne.s32.totalorder %s42, %s45
      %p54 = scmp.eq.s32.totalorder %s23, 1
      %p55 = por %p53, %p54
      %p56 = scmp.ne.s32.totalorder %s45, %s46
      %p57 = scmp.eq.s32.totalorder %s23, 0
      %p58 = por %p56, %p57
      %p59 = scmp.ne.s32.totalorder %s45, %s46
      %p60 = scmp.eq.s32.totalorder %s24, 1
      %p61 = por %p59, %p60
      %p63 = scmp.ne.s32.totalorder %s46, %s62
      %p64 = scmp.eq.s32.totalorder %s24, 0
      %p65 = por %p63, %p64
      %s67 = sadd.s32 %s66, 1
      %p70 = scmp.eq.s32.totalorder %s18, 1
      %p71 = scmp.ne.s32.totalorder %s66, %s68
      %p72 = scmp.eq.s32.totalorder %s18, 0
      %p73 = por %p71, %p72
      %p74 = scmp.ne.s32.totalorder %s66, %s68
      %p75 = scmp.eq.s32.totalorder %s23, 1
      %p76 = por %p74, %p75
      %p77 = scmp.ne.s32.totalorder %s68, %s69
      %p78 = scmp.eq.s32.totalorder %s23, 0
      %p79 = por %p77, %p78
      %p80 = scmp.ne.s32.totalorder %s68, %s69
      %p81 = scmp.eq.s32.totalorder %s24, 1
      %p82 = por %p80, %p81
      %p84 = scmp.ne.s32.totalorder %s69, %s83
      %p85 = scmp.eq.s32.totalorder %s24, 0
      %p86 = por %p84, %p85
      %s87 = ssub.s32 %s25, %s37
      %p88 = scmp.eq.s32.totalorder %s87, 0
      %s90 = sadd.s32 %s89, 1
      %s91 = scalar_select %p88, %s89, %s90
      %p94 = pneg %p88
      %p95 = scmp.eq.s32.totalorder %s18, 1
      %p96 = por %p94, %p95
      %p97 = scmp.ne.s32.totalorder %s89, %s92
      %p98 = scmp.eq.s32.totalorder %s18, 0
      %p99 = por %p97, %p98
      %p100 = scmp.ne.s32.totalorder %s89, %s92
      %p101 = scmp.eq.s32.totalorder %s23, 1
      %p102 = por %p100, %p101
      %p103 = scmp.ne.s32.totalorder %s92, %s93
      %p104 = scmp.eq.s32.totalorder %s23, 0
      %p105 = por %p103, %p104
      %p106 = scmp.ne.s32.totalorder %s92, %s93
      %p107 = scmp.eq.s32.totalorder %s24, 1
      %p108 = por %p106, %p107
      %p110 = scmp.ne.s32.totalorder %s93, %s109
      %p111 = scmp.eq.s32.totalorder %s24, 0
      %p112 = por %p110, %p111
      %s114 = sadd.s32 %s113, 1
      %p117 = scmp.eq.s32.totalorder %s18, 1
      %p118 = scmp.ne.s32.totalorder %s113, %s115
      %p119 = scmp.eq.s32.totalorder %s18, 0
      %p120 = por %p118, %p119
      %p121 = scmp.ne.s32.totalorder %s113, %s115
      %p122 = scmp.eq.s32.totalorder %s23, 1
      %p123 = por %p121, %p122
      %p124 = scmp.ne.s32.totalorder %s115, %s116
      %p125 = scmp.eq.s32.totalorder %s23, 0
      %p126 = por %p124, %p125
      %p127 = scmp.ne.s32.totalorder %s115, %s116
      %p128 = scmp.eq.s32.totalorder %s24, 1
      %p129 = por %p127, %p128
      %p131 = scmp.ne.s32.totalorder %s116, %s130
      %p132 = scmp.eq.s32.totalorder %s24, 0
      %p133 = por %p131, %p132
      %s135 = sadd.s32 %s134, 1
      %p138 = scmp.eq.s32.totalorder %s18, 1
      %p139 = scmp.ne.s32.totalorder %s134, %s136
      %p140 = scmp.eq.s32.totalorder %s18, 0
      %p141 = por %p139, %p140
      %p142 = scmp.ne.s32.totalorder %s134, %s136
      %p143 = scmp.eq.s32.totalorder %s23, 1
      %p144 = por %p142, %p143
      %p145 = scmp.ne.s32.totalorder %s136, %s137
      %p146 = scmp.eq.s32.totalorder %s23, 0
      %p147 = por %p145, %p146
      %p148 = scmp.ne.s32.totalorder %s136, %s137
      %p149 = scmp.eq.s32.totalorder %s24, 1
      %p150 = por %p148, %p149
      %p152 = scmp.ne.s32.totalorder %s137, %s151
      %p153 = scmp.eq.s32.totalorder %s24, 0
      %p154 = por %p152, %p153
      %s156 = sadd.s32 %s155, 1
      %p159 = scmp.eq.s32.totalorder %s18, 1
      %p160 = scmp.ne.s32.totalorder %s155, %s157
      %p161 = scmp.eq.s32.totalorder %s18, 0
      %p162 = por %p160, %p161
      %p163 = scmp.ne.s32.totalorder %s155, %s157
      %p164 = scmp.eq.s32.totalorder %s23, 1
      %p165 = por %p163, %p164
      %p166 = scmp.ne.s32.totalorder %s157, %s158
      %p167 = scmp.eq.s32.totalorder %s23, 0
      %p168 = por %p166, %p167
      %p169 = scmp.ne.s32.totalorder %s157, %s158
      %p170 = scmp.eq.s32.totalorder %s24, 1
      %p171 = por %p169, %p170
      %p173 = scmp.ne.s32.totalorder %s158, %s172
      %p174 = scmp.eq.s32.totalorder %s24, 0
      %p175 = por %p173, %p174
      %s176 = ssub.s32 %s25, %s37
      %p177 = scmp.eq.s32.totalorder %s176, 0
      %s179 = sadd.s32 %s178, 1
      %s180 = scalar_select %p177, %s178, %s179
      %p183 = pneg %p177
      %p184 = scmp.eq.s32.totalorder %s18, 1
      %p185 = por %p183, %p184
      %p186 = scmp.ne.s32.totalorder %s178, %s181
      %p187 = scmp.eq.s32.totalorder %s18, 0
      %p188 = por %p186, %p187
      %p189 = scmp.ne.s32.totalorder %s178, %s181
      %p190 = scmp.eq.s32.totalorder %s23, 1
      %p191 = por %p189, %p190
      %p192 = scmp.ne.s32.totalorder %s181, %s182
      %p193 = scmp.eq.s32.totalorder %s23, 0
      %p194 = por %p192, %p193
      %p195 = scmp.ne.s32.totalorder %s181, %s182
      %p196 = scmp.eq.s32.totalorder %s24, 1
      %p197 = por %p195, %p196
      %p199 = scmp.ne.s32.totalorder %s182, %s198
      %p200 = scmp.eq.s32.totalorder %s24, 0
      %p201 = por %p199, %p200
      %p202 = scmp.le.s32.totalorder 1, %s18
      %p203 = scmp.lt.s32.totalorder %s18, 3
      %p204 = pnand %p202, %p203
      %p205 = pneg %p204
      // Predicated region
      $region9: #{tpu_custom_call.1} parent=5 // pred_check
        _
      $region10: #{tpu_custom_call.1} parent=5 // pred_check_branch
        %207 = sbr.rel (%p204) target = $region12
      $region11: #{tpu_custom_call.1} parent=5 // pred_region
        %s208 = ssub.s32 %s18, 1
        // Predicated region
        $region13: #{tpu_custom_call.1} parent=11 // pred_check
          %p209 = pneg %p79
        $region14: #{tpu_custom_call.1} parent=11 // pred_check_branch
          %211 = sbr.rel (%p209) target = $region16
        $region15: #{tpu_custom_call.1} parent=11 // pred_region
          _
        $region16: #{tpu_custom_call.1} parent=11 // pred_fallthru
          _
        // Predicated region
        $region17: #{tpu_custom_call.1} parent=11 // pred_check
          %p212 = pneg %p126
        $region18: #{tpu_custom_call.1} parent=11 // pred_check_branch
          %214 = sbr.rel (%p212) target = $region20
        $region19: #{tpu_custom_call.1} parent=11 // pred_region
          _
        $region20: #{tpu_custom_call.1} parent=11 // pred_fallthru
          _
        // Predicated region
        $region21: #{tpu_custom_call.1} parent=11 // pred_check
          %p215 = pneg %p147
        $region22: #{tpu_custom_call.1} parent=11 // pred_check_branch
          %217 = sbr.rel (%p215) target = $region24
        $region23: #{tpu_custom_call.1} parent=11 // pred_region
          _
        $region24: #{tpu_custom_call.1} parent=11 // pred_fallthru
          _
        // Predicated region
        $region25: #{tpu_custom_call.1} parent=11 // pred_check
          %p218 = pneg %p168
        $region26: #{tpu_custom_call.1} parent=11 // pred_check_branch
          %220 = sbr.rel (%p218) target = $region28
        $region27: #{tpu_custom_call.1} parent=11 // pred_region
          _
        $region28: #{tpu_custom_call.1} parent=11 // pred_fallthru
          _
      $region12: #{tpu_custom_call.1} parent=5 // pred_fallthru
        _
      %p221 = scmp.lt.s32.totalorder %s18, 2
      // Predicated region
      $region29: #{tpu_custom_call.1} parent=5 // pred_check
        %p222 = pneg %p221
      $region30: #{tpu_custom_call.1} parent=5 // pred_check_branch
        %224 = sbr.rel (%p222) target = $region32
      $region31: #{tpu_custom_call.1} parent=5 // pred_region
        // Predicated region
        $region33: #{tpu_custom_call.1} parent=31 // pred_check
          %p225 = pneg %p52
        $region34: #{tpu_custom_call.1} parent=31 // pred_check_branch
          %227 = sbr.rel (%p225) target = $region36
        $region35: #{tpu_custom_call.1} parent=31 // pred_region
          %s228 = sand.u32 %s42, 1
          %s229 = scalar_lea.sflag [#allocation4], %s228
          %s230 = sand.u32 %s42, 1
          %s231 = smul.addr %s230, 288
          %s232 = scalar_lea.vmem [#allocation3], %s231
          %s233 = smul.u32 24, %s25
          %s234 = smul.u32 3, %s26
          %236 = vsyncadd %s229, 0
          %s237 = smul.addr %s233, 3
          %s238 = sadd.s32 %s234, %s237
          %s239 = smul.addr %s238, 4
          %s240 = scalar_lea.hbm %s0, %s239
          %s241 = sshll.u32 %s240, 4
          %s242 = int_to_ptr.hbm [resolvable:$true] %s241
          %s243 = sshll.u32 %s232, 4
          %s244 = int_to_ptr.vmem [resolvable:$true] %s243
          %249 = dma.hbm_to_vmem [thread:$0]  %s242, 4608, %s244, %s229, 192, 192, 12
        $region36: #{tpu_custom_call.1} parent=31 // pred_fallthru
          _
        // Predicated region
        $region37: #{tpu_custom_call.1} parent=31 // pred_check
          %p250 = pneg %p99
        $region38: #{tpu_custom_call.1} parent=31 // pred_check_branch
          %252 = sbr.rel (%p250) target = $region40
        $region39: #{tpu_custom_call.1} parent=31 // pred_region
          %s253 = smul.u32 24, %s25
          %p254 = scmp.lt.s32.totalorder %s253, 47
          %s255 = scalar_select %p254, %s253, 47
          %s256 = smul.addr %s255, 8
          %s257 = scalar_lea.vmem %s2, %s256
          %s258 = smul.u32 24, %s25
        $region40: #{tpu_custom_call.1} parent=31 // pred_fallthru
          _
      $region32: #{tpu_custom_call.1} parent=5 // pred_fallthru
        _
      %p259 = scmp.le.s32.totalorder 1, %s18
      %p260 = scmp.lt.s32.totalorder %s18, 3
      %p261 = pnand %p259, %p260
      %p262 = pneg %p261
      // Predicated region
      $region41: #{tpu_custom_call.1} parent=5 // pred_check
        _
      $region42: #{tpu_custom_call.1} parent=5 // pred_check_branch
        %264 = sbr.rel (%p261) target = $region44
      $region43: #{tpu_custom_call.1} parent=5 // pred_region
        %s265 = ssub.s32 %s18, 1
        %s266 = sand.u32 %s45, 1
        %s267 = scalar_lea.sflag [#allocation4], %s266
        %s268 = sand.u32 %s45, 1
        %s269 = smul.addr %s268, 288
        %s270 = scalar_lea.vmem [#allocation3], %s269
        // Predicated region
        $region45: #{tpu_custom_call.1} parent=43 // pred_check
          %p271 = pneg %p58
        $region46: #{tpu_custom_call.1} parent=43 // pred_check_branch
          %273 = sbr.rel (%p271) target = $region48
        $region47: #{tpu_custom_call.1} parent=43 // pred_region
          %275 = dma.done %s267, 4608
        $region48: #{tpu_custom_call.1} parent=43 // pred_fallthru
          _
        %s276 = sand.u32 %s45, 1
        %s277 = scalar_lea.sflag [#allocation4], %s276
        %s278 = sand.u32 %s45, 1
        %s279 = smul.addr %s278, 288
        %s280 = scalar_lea.vmem [#allocation3], %s279
        %p281 = pneg %p58
        %p282 = pneg %p55
        %p283 = pneg %p79
        %p284 = pneg %p76
        %s285 = smul.u32 24, %s27
        %p286 = scmp.lt.s32.totalorder %s285, 47
        %s287 = scalar_select %p286, %s285, 47
        %s288 = smul.addr %s287, 8
        %s289 = scalar_lea.vmem %s2, %s288
        %p290 = pneg %p105
        %p291 = pneg %p102
        %p292 = pneg %p126
        %p293 = pneg %p123
        %p294 = pneg %p147
        %p295 = pneg %p144
        %p296 = pneg %p168
        %p297 = pneg %p165
        %p298 = pneg %p194
        %p299 = pneg %p191
        %s300 = sand.u32 %s181, 1
        %s301 = scalar_lea.sflag [#allocation5], %s300
        %s302 = sand.u32 %s181, 1
        %s303 = smul.addr %s302, 96
        %s304 = scalar_lea.vmem [#allocation6], %s303
        %s305 = smul.u32 24, %s27
        %s306 = smul.u32 3, %s28
        %s307 = smul.u32 24, %s27
        %p308 = scmp.lt.s32.totalorder %s307, 47
        %s309 = scalar_select %p308, %s307, 47
        %s310 = smul.addr %s309, 8
        %s311 = scalar_lea.vmem %s2, %s310
        %s312 = smul.u32 24, %s27
        %s313 = smul.u32 24, %s27
        %p314 = scmp.eq.s32.totalorder %s28, 0
        // Predicated region
        $region49: #{tpu_custom_call.1} parent=43 // pred_check
          %p315 = pneg %p314
        $region50: #{tpu_custom_call.1} parent=43 // pred_check_branch
          %317 = sbr.rel (%p315) target = $region52
        $region51: #{tpu_custom_call.1} parent=43 // pred_region
          %318 = vst [vmem:[#allocation2] sm:$0xff] 0.0
          %319 = vst [vmem:[#allocation2 + $0x8] sm:$0xff] 0.0
          %320 = vst [vmem:[#allocation2 + $0x10] sm:$0xff] 0.0
          %321 = vst [vmem:[#allocation2 + $0x18] sm:$0xff] 0.0
          %322 = vst [vmem:[#allocation2 + $0x20] sm:$0xff] 0.0
          %323 = vst [vmem:[#allocation2 + $0x28] sm:$0xff] 0.0
          %324 = vst [vmem:[#allocation2 + $0x30] sm:$0xff] 0.0
          %325 = vst [vmem:[#allocation2 + $0x38] sm:$0xff] 0.0
          %326 = vst [vmem:[#allocation2 + $0x40] sm:$0xff] 0.0
          %327 = vst [vmem:[#allocation2 + $0x48] sm:$0xff] 0.0
          %328 = vst [vmem:[#allocation2 + $0x50] sm:$0xff] 0.0
          %329 = vst [vmem:[#allocation2 + $0x58] sm:$0xff] 0.0
          %330 = vst [vmem:[#allocation2 + $0x60] sm:$0xff] 0.0
          %331 = vst [vmem:[#allocation2 + $0x68] sm:$0xff] 0.0
          %332 = vst [vmem:[#allocation2 + $0x70] sm:$0xff] 0.0
          %333 = vst [vmem:[#allocation2 + $0x78] sm:$0xff] 0.0
          %334 = vst [vmem:[#allocation2 + $0x80] sm:$0xff] 0.0
          %335 = vst [vmem:[#allocation2 + $0x88] sm:$0xff] 0.0
          %336 = vst [vmem:[#allocation2 + $0x90] sm:$0xff] 0.0
          %337 = vst [vmem:[#allocation2 + $0x98] sm:$0xff] 0.0
          %338 = vst [vmem:[#allocation2 + $0xa0] sm:$0xff] 0.0
          %339 = vst [vmem:[#allocation2 + $0xa8] sm:$0xff] 0.0
          %340 = vst [vmem:[#allocation2 + $0xb0] sm:$0xff] 0.0
          %341 = vst [vmem:[#allocation2 + $0xb8] sm:$0xff] 0.0
        $region52: #{tpu_custom_call.1} parent=43 // pred_fallthru
          _
        %s342 = smul.u32 %s28, 384
        %s343 = sshra.s32 %s342, 3
        %s344 = sand.u32 %s342, 7
        %s345 = smul.addr %s343, 4
        %s346 = scalar_lea.vmem %s1, %s345
        %v347 = vld [vmem:[%s346] sm:$0xf]
        %v348 = vld [vmem:[%s346 + $0x4] sm:$0xf]
        %v349 = vld [vmem:[%s346 + $0x8] sm:$0xf]
        %v350 = vld [vmem:[%s346 + $0xc] sm:$0xf]
        %v351 = vld [vmem:[%s346 + $0x10] sm:$0xf]
        %v352 = vld [vmem:[%s346 + $0x14] sm:$0xf]
        %v353 = vld [vmem:[%s346 + $0x18] sm:$0xf]
        %v354 = vld [vmem:[%s346 + $0x1c] sm:$0xf]
        %v355 = vld [vmem:[%s346 + $0x20] sm:$0xf]
        %v356 = vld [vmem:[%s346 + $0x24] sm:$0xf]
        %v357 = vld [vmem:[%s346 + $0x28] sm:$0xf]
        %v358 = vld [vmem:[%s346 + $0x2c] sm:$0xf]
        %v359 = vld [vmem:[%s346 + $0x30] sm:$0xf]
        %v360 = vld [vmem:[%s346 + $0x34] sm:$0xf]
        %v361 = vld [vmem:[%s346 + $0x38] sm:$0xf]
        %v362 = vld [vmem:[%s346 + $0x3c] sm:$0xf]
        %v363 = vld [vmem:[%s346 + $0x40] sm:$0xf]
        %v364 = vld [vmem:[%s346 + $0x44] sm:$0xf]
        %v365 = vld [vmem:[%s346 + $0x48] sm:$0xf]
        %v366 = vld [vmem:[%s346 + $0x4c] sm:$0xf]
        %v367 = vld [vmem:[%s346 + $0x50] sm:$0xf]
        %v368 = vld [vmem:[%s346 + $0x54] sm:$0xf]
        %v369 = vld [vmem:[%s346 + $0x58] sm:$0xf]
        %v370 = vld [vmem:[%s346 + $0x5c] sm:$0xf]
        %v371 = vld [vmem:[%s346 + $0x60] sm:$0xf]
        %v372 = vld [vmem:[%s346 + $0x64] sm:$0xf]
        %v373 = vld [vmem:[%s346 + $0x68] sm:$0xf]
        %v374 = vld [vmem:[%s346 + $0x6c] sm:$0xf]
        %v375 = vld [vmem:[%s346 + $0x70] sm:$0xf]
        %v376 = vld [vmem:[%s346 + $0x74] sm:$0xf]
        %v377 = vld [vmem:[%s346 + $0x78] sm:$0xf]
        %v378 = vld [vmem:[%s346 + $0x7c] sm:$0xf]
        %v379 = vld [vmem:[%s346 + $0x80] sm:$0xf]
        %v380 = vld [vmem:[%s346 + $0x84] sm:$0xf]
        %v381 = vld [vmem:[%s346 + $0x88] sm:$0xf]
        %v382 = vld [vmem:[%s346 + $0x8c] sm:$0xf]
        %v383 = vld [vmem:[%s346 + $0x90] sm:$0xf]
        %v384 = vld [vmem:[%s346 + $0x94] sm:$0xf]
        %v385 = vld [vmem:[%s346 + $0x98] sm:$0xf]
        %v386 = vld [vmem:[%s346 + $0x9c] sm:$0xf]
        %v387 = vld [vmem:[%s346 + $0xa0] sm:$0xf]
        %v388 = vld [vmem:[%s346 + $0xa4] sm:$0xf]
        %v389 = vld [vmem:[%s346 + $0xa8] sm:$0xf]
        %v390 = vld [vmem:[%s346 + $0xac] sm:$0xf]
        %v391 = vld [vmem:[%s346 + $0xb0] sm:$0xf]
        %v392 = vld [vmem:[%s346 + $0xb4] sm:$0xf]
        %v393 = vld [vmem:[%s346 + $0xb8] sm:$0xf]
        %v394 = vld [vmem:[%s346 + $0xbc] sm:$0xf]
        %v395 = vld [vmem:[#allocation2] sm:$0xff]
        %v396 = vld [vmem:[#allocation2 + $0x8] sm:$0xff]
        %v397 = vld [vmem:[#allocation2 + $0x10] sm:$0xff]
        %v398 = vld [vmem:[#allocation2 + $0x18] sm:$0xff]
        %v399 = vld [vmem:[#allocation2 + $0x20] sm:$0xff]
        %v400 = vld [vmem:[#allocation2 + $0x28] sm:$0xff]
        %v401 = vld [vmem:[#allocation2 + $0x30] sm:$0xff]
        %v402 = vld [vmem:[#allocation2 + $0x38] sm:$0xff]
        %v403 = vld [vmem:[#allocation2 + $0x40] sm:$0xff]
        %v404 = vld [vmem:[#allocation2 + $0x48] sm:$0xff]
        %v405 = vld [vmem:[#allocation2 + $0x50] sm:$0xff]
        %v406 = vld [vmem:[#allocation2 + $0x58] sm:$0xff]
        %v407 = vld [vmem:[#allocation2 + $0x60] sm:$0xff]
        %v408 = vld [vmem:[#allocation2 + $0x68] sm:$0xff]
        %v409 = vld [vmem:[#allocation2 + $0x70] sm:$0xff]
        %v410 = vld [vmem:[#allocation2 + $0x78] sm:$0xff]
        %v411 = vld [vmem:[#allocation2 + $0x80] sm:$0xff]
        %v412 = vld [vmem:[#allocation2 + $0x88] sm:$0xff]
        %v413 = vld [vmem:[#allocation2 + $0x90] sm:$0xff]
        %v414 = vld [vmem:[#allocation2 + $0x98] sm:$0xff]
        %v415 = vld [vmem:[#allocation2 + $0xa0] sm:$0xff]
        %v416 = vld [vmem:[#allocation2 + $0xa8] sm:$0xff]
        %v417 = vld [vmem:[#allocation2 + $0xb0] sm:$0xff]
        %v418 = vld [vmem:[#allocation2 + $0xb8] sm:$0xff]
        %v419 = vld [vmem:[%s270] sm:$0xff]
        %v420 = vld [vmem:[%s270 + $0x8] sm:$0xf]
        %v421 = vld [vmem:[%s270 + $0xc] sm:$0xff]
        %v422 = vld [vmem:[%s270 + $0x14] sm:$0xf]
        %v423 = vld [vmem:[%s270 + $0x18] sm:$0xff]
        %v424 = vld [vmem:[%s270 + $0x20] sm:$0xf]
        %v425 = vld [vmem:[%s270 + $0x24] sm:$0xff]
        %v426 = vld [vmem:[%s270 + $0x2c] sm:$0xf]
        %v427 = vld [vmem:[%s270 + $0x30] sm:$0xff]
        %v428 = vld [vmem:[%s270 + $0x38] sm:$0xf]
        %v429 = vld [vmem:[%s270 + $0x3c] sm:$0xff]
        %v430 = vld [vmem:[%s270 + $0x44] sm:$0xf]
        %v431 = vld [vmem:[%s270 + $0x48] sm:$0xff]
        %v432 = vld [vmem:[%s270 + $0x50] sm:$0xf]
        %v433 = vld [vmem:[%s270 + $0x54] sm:$0xff]
        %v434 = vld [vmem:[%s270 + $0x5c] sm:$0xf]
        %v435 = vld [vmem:[%s270 + $0x60] sm:$0xff]
        %v436 = vld [vmem:[%s270 + $0x68] sm:$0xf]
        %v437 = vld [vmem:[%s270 + $0x6c] sm:$0xff]
        %v438 = vld [vmem:[%s270 + $0x74] sm:$0xf]
        %v439 = vld [vmem:[%s270 + $0x78] sm:$0xff]
        %v440 = vld [vmem:[%s270 + $0x80] sm:$0xf]
        %v441 = vld [vmem:[%s270 + $0x84] sm:$0xff]
        %v442 = vld [vmem:[%s270 + $0x8c] sm:$0xf]
        %v443 = vld [vmem:[%s270 + $0x90] sm:$0xff]
        %v444 = vld [vmem:[%s270 + $0x98] sm:$0xf]
        %v445 = vld [vmem:[%s270 + $0x9c] sm:$0xff]
        %v446 = vld [vmem:[%s270 + $0xa4] sm:$0xf]
        %v447 = vld [vmem:[%s270 + $0xa8] sm:$0xff]
        %v448 = vld [vmem:[%s270 + $0xb0] sm:$0xf]
        %v449 = vld [vmem:[%s270 + $0xb4] sm:$0xff]
        %v450 = vld [vmem:[%s270 + $0xbc] sm:$0xf]
        %v451 = vld [vmem:[%s270 + $0xc0] sm:$0xff]
        %v452 = vld [vmem:[%s270 + $0xc8] sm:$0xf]
        %v453 = vld [vmem:[%s270 + $0xcc] sm:$0xff]
        %v454 = vld [vmem:[%s270 + $0xd4] sm:$0xf]
        %v455 = vld [vmem:[%s270 + $0xd8] sm:$0xff]
        %v456 = vld [vmem:[%s270 + $0xe0] sm:$0xf]
        %v457 = vld [vmem:[%s270 + $0xe4] sm:$0xff]
        %v458 = vld [vmem:[%s270 + $0xec] sm:$0xf]
        %v459 = vld [vmem:[%s270 + $0xf0] sm:$0xff]
        %v460 = vld [vmem:[%s270 + $0xf8] sm:$0xf]
        %v461 = vld [vmem:[%s270 + $0xfc] sm:$0xff]
        %v462 = vld [vmem:[%s270 + $0x104] sm:$0xf]
        %v463 = vld [vmem:[%s270 + $0x108] sm:$0xff]
        %v464 = vld [vmem:[%s270 + $0x110] sm:$0xf]
        %v465 = vld [vmem:[%s270 + $0x114] sm:$0xff]
        %v466 = vld [vmem:[%s270 + $0x11c] sm:$0xf]
        %v515 = vunpack.c.l.b16 %v419
        %v516 = vunpack.c.h.b16 %v419
        %v517 = vunpack.c.l.b16 %v420
        %v518 = vunpack.c.l.b16 %v421
        %v519 = vunpack.c.h.b16 %v421
        %v520 = vunpack.c.l.b16 %v422
        %v521 = vunpack.c.l.b16 %v423
        %v522 = vunpack.c.h.b16 %v423
        %v523 = vunpack.c.l.b16 %v424
        %v524 = vunpack.c.l.b16 %v425
        %v525 = vunpack.c.h.b16 %v425
        %v526 = vunpack.c.l.b16 %v426
        %v527 = vunpack.c.l.b16 %v427
        %v528 = vunpack.c.h.b16 %v427
        %v529 = vunpack.c.l.b16 %v428
        %v530 = vunpack.c.l.b16 %v429
        %v531 = vunpack.c.h.b16 %v429
        %v532 = vunpack.c.l.b16 %v430
        %v533 = vunpack.c.l.b16 %v431
        %v534 = vunpack.c.h.b16 %v431
        %v535 = vunpack.c.l.b16 %v432
        %v536 = vunpack.c.l.b16 %v433
        %v537 = vunpack.c.h.b16 %v433
        %v538 = vunpack.c.l.b16 %v434
        %v539 = vunpack.c.l.b16 %v435
        %v540 = vunpack.c.h.b16 %v435
        %v541 = vunpack.c.l.b16 %v436
        %v542 = vunpack.c.l.b16 %v437
        %v543 = vunpack.c.h.b16 %v437
        %v544 = vunpack.c.l.b16 %v438
        %v545 = vunpack.c.l.b16 %v439
        %v546 = vunpack.c.h.b16 %v439
        %v547 = vunpack.c.l.b16 %v440
        %v548 = vunpack.c.l.b16 %v441
        %v549 = vunpack.c.h.b16 %v441
        %v550 = vunpack.c.l.b16 %v442
        %v551 = vunpack.c.l.b16 %v443
        %v552 = vunpack.c.h.b16 %v443
        %v553 = vunpack.c.l.b16 %v444
        %v554 = vunpack.c.l.b16 %v445
        %v555 = vunpack.c.h.b16 %v445
        %v556 = vunpack.c.l.b16 %v446
        %v557 = vunpack.c.l.b16 %v447
        %v558 = vunpack.c.h.b16 %v447
        %v559 = vunpack.c.l.b16 %v448
        %v560 = vunpack.c.l.b16 %v449
        %v561 = vunpack.c.h.b16 %v449
        %v562 = vunpack.c.l.b16 %v450
        %v563 = vunpack.c.l.b16 %v451
        %v564 = vunpack.c.h.b16 %v451
        %v565 = vunpack.c.l.b16 %v452
        %v566 = vunpack.c.l.b16 %v453
        %v567 = vunpack.c.h.b16 %v453
        %v568 = vunpack.c.l.b16 %v454
        %v569 = vunpack.c.l.b16 %v455
        %v570 = vunpack.c.h.b16 %v455
        %v571 = vunpack.c.l.b16 %v456
        %v572 = vunpack.c.l.b16 %v457
        %v573 = vunpack.c.h.b16 %v457
        %v574 = vunpack.c.l.b16 %v458
        %v575 = vunpack.c.l.b16 %v459
        %v576 = vunpack.c.h.b16 %v459
        %v577 = vunpack.c.l.b16 %v460
        %v578 = vunpack.c.l.b16 %v461
        %v579 = vunpack.c.h.b16 %v461
        %v580 = vunpack.c.l.b16 %v462
        %v581 = vunpack.c.l.b16 %v463
        %v582 = vunpack.c.h.b16 %v463
        %v583 = vunpack.c.l.b16 %v464
        %v584 = vunpack.c.l.b16 %v465
        %v585 = vunpack.c.h.b16 %v465
        %v586 = vunpack.c.l.b16 %v466
        %v587 = vpack.c.b16 %v518, %v515
        %v588 = vpack.c.b16 %v519, %v516
        %v589 = vpack.c.b16 %v520, %v517
        %v590 = vpack.c.b16 %v524, %v521
        %v591 = vpack.c.b16 %v525, %v522
        %v592 = vpack.c.b16 %v526, %v523
        %v593 = vpack.c.b16 %v530, %v527
        %v594 = vpack.c.b16 %v531, %v528
        %v595 = vpack.c.b16 %v532, %v529
        %v596 = vpack.c.b16 %v536, %v533
        %v597 = vpack.c.b16 %v537, %v534
        %v598 = vpack.c.b16 %v538, %v535
        %v599 = vpack.c.b16 %v542, %v539
        %v600 = vpack.c.b16 %v543, %v540
        %v601 = vpack.c.b16 %v544, %v541
        %v602 = vpack.c.b16 %v548, %v545
        %v603 = vpack.c.b16 %v549, %v546
        %v604 = vpack.c.b16 %v550, %v547
        %v605 = vpack.c.b16 %v554, %v551
        %v606 = vpack.c.b16 %v555, %v552
        %v607 = vpack.c.b16 %v556, %v553
        %v608 = vpack.c.b16 %v560, %v557
        %v609 = vpack.c.b16 %v561, %v558
        %v610 = vpack.c.b16 %v562, %v559
        %v611 = vpack.c.b16 %v566, %v563
        %v612 = vpack.c.b16 %v567, %v564
        %v613 = vpack.c.b16 %v568, %v565
        %v614 = vpack.c.b16 %v572, %v569
        %v615 = vpack.c.b16 %v573, %v570
        %v616 = vpack.c.b16 %v574, %v571
        %v617 = vpack.c.b16 %v578, %v575
        %v618 = vpack.c.b16 %v579, %v576
        %v619 = vpack.c.b16 %v580, %v577
        %v620 = vpack.c.b16 %v584, %v581
        %v621 = vpack.c.b16 %v585, %v582
        %v622 = vpack.c.b16 %v586, %v583
        %v707 = vunpack.c.l.b16 %v347
        %v708 = vunpack.c.l.b16 %v348
        %v709 = vunpack.c.l.b16 %v349
        %v710 = vunpack.c.l.b16 %v350
        %v711 = vunpack.c.l.b16 %v351
        %v712 = vunpack.c.l.b16 %v352
        %v713 = vunpack.c.l.b16 %v353
        %v714 = vunpack.c.l.b16 %v354
        %v715 = vunpack.c.l.b16 %v355
        %v716 = vunpack.c.l.b16 %v356
        %v717 = vunpack.c.l.b16 %v357
        %v718 = vunpack.c.l.b16 %v358
        %v719 = vunpack.c.l.b16 %v359
        %v720 = vunpack.c.l.b16 %v360
        %v721 = vunpack.c.l.b16 %v361
        %v722 = vunpack.c.l.b16 %v362
        %v723 = vunpack.c.l.b16 %v363
        %v724 = vunpack.c.l.b16 %v364
        %v725 = vunpack.c.l.b16 %v365
        %v726 = vunpack.c.l.b16 %v366
        %v727 = vunpack.c.l.b16 %v367
        %v728 = vunpack.c.l.b16 %v368
        %v729 = vunpack.c.l.b16 %v369
        %v730 = vunpack.c.l.b16 %v370
        %v731 = vunpack.c.l.b16 %v371
        %v732 = vunpack.c.l.b16 %v372
        %v733 = vunpack.c.l.b16 %v373
        %v734 = vunpack.c.l.b16 %v374
        %v735 = vunpack.c.l.b16 %v375
        %v736 = vunpack.c.l.b16 %v376
        %v737 = vunpack.c.l.b16 %v377
        %v738 = vunpack.c.l.b16 %v378
        %v739 = vunpack.c.l.b16 %v379
        %v740 = vunpack.c.l.b16 %v380
        %v741 = vunpack.c.l.b16 %v381
        %v742 = vunpack.c.l.b16 %v382
        %v743 = vunpack.c.l.b16 %v383
        %v744 = vunpack.c.l.b16 %v384
        %v745 = vunpack.c.l.b16 %v385
        %v746 = vunpack.c.l.b16 %v386
        %v747 = vunpack.c.l.b16 %v387
        %v748 = vunpack.c.l.b16 %v388
        %v749 = vunpack.c.l.b16 %v389
        %v750 = vunpack.c.l.b16 %v390
        %v751 = vunpack.c.l.b16 %v391
        %v752 = vunpack.c.l.b16 %v392
        %v753 = vunpack.c.l.b16 %v393
        %v754 = vunpack.c.l.b16 %v394
        %v755 = vpack.c.b16 %v708, %v707
        %v756 = vpack.c.b16 %v710, %v709
        %v757 = vpack.c.b16 %v712, %v711
        %v758 = vpack.c.b16 %v714, %v713
        %v759 = vpack.c.b16 %v716, %v715
        %v760 = vpack.c.b16 %v718, %v717
        %v761 = vpack.c.b16 %v720, %v719
        %v762 = vpack.c.b16 %v722, %v721
        %v763 = vpack.c.b16 %v724, %v723
        %v764 = vpack.c.b16 %v726, %v725
        %v765 = vpack.c.b16 %v728, %v727
        %v766 = vpack.c.b16 %v730, %v729
        %v767 = vpack.c.b16 %v732, %v731
        %v768 = vpack.c.b16 %v734, %v733
        %v769 = vpack.c.b16 %v736, %v735
        %v770 = vpack.c.b16 %v738, %v737
        %v771 = vpack.c.b16 %v740, %v739
        %v772 = vpack.c.b16 %v742, %v741
        %v773 = vpack.c.b16 %v744, %v743
        %v774 = vpack.c.b16 %v746, %v745
        %v775 = vpack.c.b16 %v748, %v747
        %v776 = vpack.c.b16 %v750, %v749
        %v777 = vpack.c.b16 %v752, %v751
        %v778 = vpack.c.b16 %v754, %v753
        %803 = vmatpush.bf16.msra.mxu0 %v762
        %804 = vmatpush.bf16.msra.mxu0 %v761
        %805 = vmatpush.bf16.msra.mxu0 %v760
        %806 = vmatpush.bf16.msra.mxu0 %v759
        %807 = vmatpush.bf16.msra.mxu0 %v758
        %808 = vmatpush.bf16.msra.mxu0 %v757
        %809 = vmatpush.bf16.msra.mxu0 %v756
        %810 = vmatpush.bf16.msra.mxu0 %v755
        %811 = vmatmul.bf16.gmra.mxu0 %v587
        %v812 = vpop.f32.mrf.mxu0
        %v813 = vadd.f32 0.0, %v812
        %v814 = vpop.f32.mrf.mxu0
        %v815 = vadd.f32 0.0, %v814
        %816 = vmatmul.bf16.gmra.mxu0 %v590
        %v817 = vpop.f32.mrf.mxu0
        %v818 = vadd.f32 0.0, %v817
        %v819 = vpop.f32.mrf.mxu0
        %v820 = vadd.f32 0.0, %v819
        %821 = vmatmul.bf16.gmra.mxu0 %v593
        %v822 = vpop.f32.mrf.mxu0
        %v823 = vadd.f32 0.0, %v822
        %v824 = vpop.f32.mrf.mxu0
        %v825 = vadd.f32 0.0, %v824
        %826 = vmatmul.bf16.gmra.mxu0 %v596
        %v827 = vpop.f32.mrf.mxu0
        %v828 = vadd.f32 0.0, %v827
        %v829 = vpop.f32.mrf.mxu0
        %v830 = vadd.f32 0.0, %v829
        %831 = vmatmul.bf16.gmra.mxu0 %v599
        %v832 = vpop.f32.mrf.mxu0
        %v833 = vadd.f32 0.0, %v832
        %v834 = vpop.f32.mrf.mxu0
        %v835 = vadd.f32 0.0, %v834
        %836 = vmatmul.bf16.gmra.mxu0 %v602
        %v837 = vpop.f32.mrf.mxu0
        %v838 = vadd.f32 0.0, %v837
        %v839 = vpop.f32.mrf.mxu0
        %v840 = vadd.f32 0.0, %v839
        %841 = vmatmul.bf16.gmra.mxu0 %v605
        %v842 = vpop.f32.mrf.mxu0
        %v843 = vadd.f32 0.0, %v842
        %v844 = vpop.f32.mrf.mxu0
        %v845 = vadd.f32 0.0, %v844
        %846 = vmatmul.bf16.gmra.mxu0 %v608
        %v847 = vpop.f32.mrf.mxu0
        %v848 = vadd.f32 0.0, %v847
        %v849 = vpop.f32.mrf.mxu0
        %v850 = vadd.f32 0.0, %v849
        %851 = vmatmul.bf16.gmra.mxu0 %v611
        %v852 = vpop.f32.mrf.mxu0
        %v853 = vadd.f32 0.0, %v852
        %v854 = vpop.f32.mrf.mxu0
        %v855 = vadd.f32 0.0, %v854
        %856 = vmatmul.bf16.gmra.mxu0 %v614
        %v857 = vpop.f32.mrf.mxu0
        %v858 = vadd.f32 0.0, %v857
        %v859 = vpop.f32.mrf.mxu0
        %v860 = vadd.f32 0.0, %v859
        %861 = vmatmul.bf16.gmra.mxu0 %v617
        %v862 = vpop.f32.mrf.mxu0
        %v863 = vadd.f32 0.0, %v862
        %v864 = vpop.f32.mrf.mxu0
        %v865 = vadd.f32 0.0, %v864
        %866 = vmatmul.bf16.gmra.mxu0 %v620
        %v867 = vpop.f32.mrf.mxu0
        %v868 = vadd.f32 0.0, %v867
        %v869 = vpop.f32.mrf.mxu0
        %v870 = vadd.f32 0.0, %v869
        %871 = vdwg.mxu0
        %872 = vmatpush.bf16.msra.mxu0 %v770
        %873 = vmatpush.bf16.msra.mxu0 %v769
        %874 = vmatpush.bf16.msra.mxu0 %v768
        %875 = vmatpush.bf16.msra.mxu0 %v767
        %876 = vmatpush.bf16.msra.mxu0 %v766
        %877 = vmatpush.bf16.msra.mxu0 %v765
        %878 = vmatpush.bf16.msra.mxu0 %v764
        %879 = vmatpush.bf16.msra.mxu0 %v763
        %880 = vmatmul.bf16.gmra.mxu0 %v588
        %v881 = vpop.f32.mrf.mxu0
        %v882 = vadd.f32 %v813, %v881
        %v883 = vpop.f32.mrf.mxu0
        %v884 = vadd.f32 %v815, %v883
        %885 = vmatmul.bf16.gmra.mxu0 %v591
        %v886 = vpop.f32.mrf.mxu0
        %v887 = vadd.f32 %v818, %v886
        %v888 = vpop.f32.mrf.mxu0
        %v889 = vadd.f32 %v820, %v888
        %890 = vmatmul.bf16.gmra.mxu0 %v594
        %v891 = vpop.f32.mrf.mxu0
        %v892 = vadd.f32 %v823, %v891
        %v893 = vpop.f32.mrf.mxu0
        %v894 = vadd.f32 %v825, %v893
        %895 = vmatmul.bf16.gmra.mxu0 %v597
        %v896 = vpop.f32.mrf.mxu0
        %v897 = vadd.f32 %v828, %v896
        %v898 = vpop.f32.mrf.mxu0
        %v899 = vadd.f32 %v830, %v898
        %900 = vmatmul.bf16.gmra.mxu0 %v600
        %v901 = vpop.f32.mrf.mxu0
        %v902 = vadd.f32 %v833, %v901
        %v903 = vpop.f32.mrf.mxu0
        %v904 = vadd.f32 %v835, %v903
        %905 = vmatmul.bf16.gmra.mxu0 %v603
        %v906 = vpop.f32.mrf.mxu0
        %v907 = vadd.f32 %v838, %v906
        %v908 = vpop.f32.mrf.mxu0
        %v909 = vadd.f32 %v840, %v908
        %910 = vmatmul.bf16.gmra.mxu0 %v606
        %v911 = vpop.f32.mrf.mxu0
        %v912 = vadd.f32 %v843, %v911
        %v913 = vpop.f32.mrf.mxu0
        %v914 = vadd.f32 %v845, %v913
        %915 = vmatmul.bf16.gmra.mxu0 %v609
        %v916 = vpop.f32.mrf.mxu0
        %v917 = vadd.f32 %v848, %v916
        %v918 = vpop.f32.mrf.mxu0
        %v919 = vadd.f32 %v850, %v918
        %920 = vmatmul.bf16.gmra.mxu0 %v612
        %v921 = vpop.f32.mrf.mxu0
        %v922 = vadd.f32 %v853, %v921
        %v923 = vpop.f32.mrf.mxu0
        %v924 = vadd.f32 %v855, %v923
        %925 = vmatmul.bf16.gmra.mxu0 %v615
        %v926 = vpop.f32.mrf.mxu0
        %v927 = vadd.f32 %v858, %v926
        %v928 = vpop.f32.mrf.mxu0
        %v929 = vadd.f32 %v860, %v928
        %930 = vmatmul.bf16.gmra.mxu0 %v618
        %v931 = vpop.f32.mrf.mxu0
        %v932 = vadd.f32 %v863, %v931
        %v933 = vpop.f32.mrf.mxu0
        %v934 = vadd.f32 %v865, %v933
        %935 = vmatmul.bf16.gmra.mxu0 %v621
        %v936 = vpop.f32.mrf.mxu0
        %v937 = vadd.f32 %v868, %v936
        %v938 = vpop.f32.mrf.mxu0
        %v939 = vadd.f32 %v870, %v938
        %940 = vdwg.mxu0
        %941 = vmatpush.bf16.msra.mxu0 %v778
        %942 = vmatpush.bf16.msra.mxu0 %v777
        %943 = vmatpush.bf16.msra.mxu0 %v776
        %944 = vmatpush.bf16.msra.mxu0 %v775
        %945 = vmatpush.bf16.msra.mxu0 %v774
        %946 = vmatpush.bf16.msra.mxu0 %v773
        %947 = vmatpush.bf16.msra.mxu0 %v772
        %948 = vmatpush.bf16.msra.mxu0 %v771
        %949 = vmatmul.bf16.gmra.mxu0 %v589
        %v950 = vpop.f32.mrf.mxu0
        %v951 = vadd.f32 %v882, %v950
        %v952 = vpop.f32.mrf.mxu0
        %v953 = vadd.f32 %v884, %v952
        %954 = vmatmul.bf16.gmra.mxu0 %v592
        %v955 = vpop.f32.mrf.mxu0
        %v956 = vadd.f32 %v887, %v955
        %v957 = vpop.f32.mrf.mxu0
        %v958 = vadd.f32 %v889, %v957
        %959 = vmatmul.bf16.gmra.mxu0 %v595
        %v960 = vpop.f32.mrf.mxu0
        %v961 = vadd.f32 %v892, %v960
        %v962 = vpop.f32.mrf.mxu0
        %v963 = vadd.f32 %v894, %v962
        %964 = vmatmul.bf16.gmra.mxu0 %v598
        %v965 = vpop.f32.mrf.mxu0
        %v966 = vadd.f32 %v897, %v965
        %v967 = vpop.f32.mrf.mxu0
        %v968 = vadd.f32 %v899, %v967
        %969 = vmatmul.bf16.gmra.mxu0 %v601
        %v970 = vpop.f32.mrf.mxu0
        %v971 = vadd.f32 %v902, %v970
        %v972 = vpop.f32.mrf.mxu0
        %v973 = vadd.f32 %v904, %v972
        %974 = vmatmul.bf16.gmra.mxu0 %v604
        %v975 = vpop.f32.mrf.mxu0
        %v976 = vadd.f32 %v907, %v975
        %v977 = vpop.f32.mrf.mxu0
        %v978 = vadd.f32 %v909, %v977
        %979 = vmatmul.bf16.gmra.mxu0 %v607
        %v980 = vpop.f32.mrf.mxu0
        %v981 = vadd.f32 %v912, %v980
        %v982 = vpop.f32.mrf.mxu0
        %v983 = vadd.f32 %v914, %v982
        %984 = vmatmul.bf16.gmra.mxu0 %v610
        %v985 = vpop.f32.mrf.mxu0
        %v986 = vadd.f32 %v917, %v985
        %v987 = vpop.f32.mrf.mxu0
        %v988 = vadd.f32 %v919, %v987
        %989 = vmatmul.bf16.gmra.mxu0 %v613
        %v990 = vpop.f32.mrf.mxu0
        %v991 = vadd.f32 %v922, %v990
        %v992 = vpop.f32.mrf.mxu0
        %v993 = vadd.f32 %v924, %v992
        %994 = vmatmul.bf16.gmra.mxu0 %v616
        %v995 = vpop.f32.mrf.mxu0
        %v996 = vadd.f32 %v927, %v995
        %v997 = vpop.f32.mrf.mxu0
        %v998 = vadd.f32 %v929, %v997
        %999 = vmatmul.bf16.gmra.mxu0 %v619
        %v1000 = vpop.f32.mrf.mxu0
        %v1001 = vadd.f32 %v932, %v1000
        %v1002 = vpop.f32.mrf.mxu0
        %v1003 = vadd.f32 %v934, %v1002
        %1004 = vmatmul.bf16.gmra.mxu0 %v622
        %v1005 = vpop.f32.mrf.mxu0
        %v1006 = vadd.f32 %v937, %v1005
        %v1007 = vpop.f32.mrf.mxu0
        %v1008 = vadd.f32 %v939, %v1007
        %1009 = vdwg.mxu0
        %v1010 = vadd.f32 %v395, %v951
        %v1011 = vadd.f32 %v396, %v953
        %v1012 = vadd.f32 %v397, %v956
        %v1013 = vadd.f32 %v398, %v958
        %v1014 = vadd.f32 %v399, %v961
        %v1015 = vadd.f32 %v400, %v963
        %v1016 = vadd.f32 %v401, %v966
        %v1017 = vadd.f32 %v402, %v968
        %v1018 = vadd.f32 %v403, %v971
        %v1019 = vadd.f32 %v404, %v973
        %v1020 = vadd.f32 %v405, %v976
        %v1021 = vadd.f32 %v406, %v978
        %v1022 = vadd.f32 %v407, %v981
        %v1023 = vadd.f32 %v408, %v983
        %v1024 = vadd.f32 %v409, %v986
        %v1025 = vadd.f32 %v410, %v988
        %v1026 = vadd.f32 %v411, %v991
        %v1027 = vadd.f32 %v412, %v993
        %v1028 = vadd.f32 %v413, %v996
        %v1029 = vadd.f32 %v414, %v998
        %v1030 = vadd.f32 %v415, %v1001
        %v1031 = vadd.f32 %v416, %v1003
        %v1032 = vadd.f32 %v417, %v1006
        %v1033 = vadd.f32 %v418, %v1008
        %1034 = vst [vmem:[#allocation2] sm:$0xff] %v1010
        %1035 = vst [vmem:[#allocation2 + $0x8] sm:$0xff] %v1011
        %1036 = vst [vmem:[#allocation2 + $0x10] sm:$0xff] %v1012
        %1037 = vst [vmem:[#allocation2 + $0x18] sm:$0xff] %v1013
        %1038 = vst [vmem:[#allocation2 + $0x20] sm:$0xff] %v1014
        %1039 = vst [vmem:[#allocation2 + $0x28] sm:$0xff] %v1015
        %1040 = vst [vmem:[#allocation2 + $0x30] sm:$0xff] %v1016
        %1041 = vst [vmem:[#allocation2 + $0x38] sm:$0xff] %v1017
        %1042 = vst [vmem:[#allocation2 + $0x40] sm:$0xff] %v1018
        %1043 = vst [vmem:[#allocation2 + $0x48] sm:$0xff] %v1019
        %1044 = vst [vmem:[#allocation2 + $0x50] sm:$0xff] %v1020
        %1045 = vst [vmem:[#allocation2 + $0x58] sm:$0xff] %v1021
        %1046 = vst [vmem:[#allocation2 + $0x60] sm:$0xff] %v1022
        %1047 = vst [vmem:[#allocation2 + $0x68] sm:$0xff] %v1023
        %1048 = vst [vmem:[#allocation2 + $0x70] sm:$0xff] %v1024
        %1049 = vst [vmem:[#allocation2 + $0x78] sm:$0xff] %v1025
        %1050 = vst [vmem:[#allocation2 + $0x80] sm:$0xff] %v1026
        %1051 = vst [vmem:[#allocation2 + $0x88] sm:$0xff] %v1027
        %1052 = vst [vmem:[#allocation2 + $0x90] sm:$0xff] %v1028
        %1053 = vst [vmem:[#allocation2 + $0x98] sm:$0xff] %v1029
        %1054 = vst [vmem:[#allocation2 + $0xa0] sm:$0xff] %v1030
        %1055 = vst [vmem:[#allocation2 + $0xa8] sm:$0xff] %v1031
        %1056 = vst [vmem:[#allocation2 + $0xb0] sm:$0xff] %v1032
        %1057 = vst [vmem:[#allocation2 + $0xb8] sm:$0xff] %v1033
        // Predicated region
        $region53: #{tpu_custom_call.1} parent=43 // pred_check
          %p1058 = pneg %p314
        $region54: #{tpu_custom_call.1} parent=43 // pred_check_branch
          %1060 = sbr.rel (%p1058) target = $region56
        $region55: #{tpu_custom_call.1} parent=43 // pred_region
          %v1061 = vld [vmem:[#allocation2] sm:$0xff]
          %v1062 = vld [vmem:[#allocation2 + $0x8] sm:$0xff]
          %v1063 = vld [vmem:[#allocation2 + $0x10] sm:$0xff]
          %v1064 = vld [vmem:[#allocation2 + $0x18] sm:$0xff]
          %v1065 = vld [vmem:[#allocation2 + $0x20] sm:$0xff]
          %v1066 = vld [vmem:[#allocation2 + $0x28] sm:$0xff]
          %v1067 = vld [vmem:[#allocation2 + $0x30] sm:$0xff]
          %v1068 = vld [vmem:[#allocation2 + $0x38] sm:$0xff]
          %v1069 = vld [vmem:[#allocation2 + $0x40] sm:$0xff]
          %v1070 = vld [vmem:[#allocation2 + $0x48] sm:$0xff]
          %v1071 = vld [vmem:[#allocation2 + $0x50] sm:$0xff]
          %v1072 = vld [vmem:[#allocation2 + $0x58] sm:$0xff]
          %v1073 = vld [vmem:[#allocation2 + $0x60] sm:$0xff]
          %v1074 = vld [vmem:[#allocation2 + $0x68] sm:$0xff]
          %v1075 = vld [vmem:[#allocation2 + $0x70] sm:$0xff]
          %v1076 = vld [vmem:[#allocation2 + $0x78] sm:$0xff]
          %v1077 = vld [vmem:[#allocation2 + $0x80] sm:$0xff]
          %v1078 = vld [vmem:[#allocation2 + $0x88] sm:$0xff]
          %v1079 = vld [vmem:[#allocation2 + $0x90] sm:$0xff]
          %v1080 = vld [vmem:[#allocation2 + $0x98] sm:$0xff]
          %v1081 = vld [vmem:[#allocation2 + $0xa0] sm:$0xff]
          %v1082 = vld [vmem:[#allocation2 + $0xa8] sm:$0xff]
          %v1083 = vld [vmem:[#allocation2 + $0xb0] sm:$0xff]
          %v1084 = vld [vmem:[#allocation2 + $0xb8] sm:$0xff]
          %v1085 = vld [vmem:[%s311] sm:$0xff]
          %v1086 = vld [vmem:[%s311 + $0x8] sm:$0xff]
          %v1087 = vld [vmem:[%s311 + $0x10] sm:$0xff]
          %v1088 = vld [vmem:[%s311 + $0x18] sm:$0xff]
          %v1089 = vld [vmem:[%s311 + $0x20] sm:$0xff]
          %v1090 = vld [vmem:[%s311 + $0x28] sm:$0xff]
          %v1091 = vld [vmem:[%s311 + $0x30] sm:$0xff]
          %v1092 = vld [vmem:[%s311 + $0x38] sm:$0xff]
          %v1093 = vld [vmem:[%s311 + $0x40] sm:$0xff]
          %v1094 = vld [vmem:[%s311 + $0x48] sm:$0xff]
          %v1095 = vld [vmem:[%s311 + $0x50] sm:$0xff]
          %v1096 = vld [vmem:[%s311 + $0x58] sm:$0xff]
          %v1097 = vld [vmem:[%s311 + $0x60] sm:$0xff]
          %v1098 = vld [vmem:[%s311 + $0x68] sm:$0xff]
          %v1099 = vld [vmem:[%s311 + $0x70] sm:$0xff]
          %v1100 = vld [vmem:[%s311 + $0x78] sm:$0xff]
          %v1101 = vld [vmem:[%s311 + $0x80] sm:$0xff]
          %v1102 = vld [vmem:[%s311 + $0x88] sm:$0xff]
          %v1103 = vld [vmem:[%s311 + $0x90] sm:$0xff]
          %v1104 = vld [vmem:[%s311 + $0x98] sm:$0xff]
          %v1105 = vld [vmem:[%s311 + $0xa0] sm:$0xff]
          %v1106 = vld [vmem:[%s311 + $0xa8] sm:$0xff]
          %v1107 = vld [vmem:[%s311 + $0xb0] sm:$0xff]
          %v1108 = vld [vmem:[%s311 + $0xb8] sm:$0xff]
          %1110 = vset.pattern.permute.xlu0 0
          %1111 = vperm.xlu0 %1110, %v1085
          %v1112 = vpop.permute.xlu0 %1111
          %1115 = vset.pattern.permute.xlu0 0
          %1116 = vperm.xlu0 %1115, %v1086
          %v1117 = vpop.permute.xlu0 %1116
          %1120 = vset.pattern.permute.xlu0 0
          %1121 = vperm.xlu0 %1120, %v1087
          %v1122 = vpop.permute.xlu0 %1121
          %1125 = vset.pattern.permute.xlu0 0
          %1126 = vperm.xlu0 %1125, %v1088
          %v1127 = vpop.permute.xlu0 %1126
          %1130 = vset.pattern.permute.xlu0 0
          %1131 = vperm.xlu0 %1130, %v1089
          %v1132 = vpop.permute.xlu0 %1131
          %1135 = vset.pattern.permute.xlu0 0
          %1136 = vperm.xlu0 %1135, %v1090
          %v1137 = vpop.permute.xlu0 %1136
          %1140 = vset.pattern.permute.xlu0 0
          %1141 = vperm.xlu0 %1140, %v1091
          %v1142 = vpop.permute.xlu0 %1141
          %1145 = vset.pattern.permute.xlu0 0
          %1146 = vperm.xlu0 %1145, %v1092
          %v1147 = vpop.permute.xlu0 %1146
          %1150 = vset.pattern.permute.xlu0 0
          %1151 = vperm.xlu0 %1150, %v1093
          %v1152 = vpop.permute.xlu0 %1151
          %1155 = vset.pattern.permute.xlu0 0
          %1156 = vperm.xlu0 %1155, %v1094
          %v1157 = vpop.permute.xlu0 %1156
          %1160 = vset.pattern.permute.xlu0 0
          %1161 = vperm.xlu0 %1160, %v1095
          %v1162 = vpop.permute.xlu0 %1161
          %1165 = vset.pattern.permute.xlu0 0
          %1166 = vperm.xlu0 %1165, %v1096
          %v1167 = vpop.permute.xlu0 %1166
          %1170 = vset.pattern.permute.xlu0 0
          %1171 = vperm.xlu0 %1170, %v1097
          %v1172 = vpop.permute.xlu0 %1171
          %1175 = vset.pattern.permute.xlu0 0
          %1176 = vperm.xlu0 %1175, %v1098
          %v1177 = vpop.permute.xlu0 %1176
          %1180 = vset.pattern.permute.xlu0 0
          %1181 = vperm.xlu0 %1180, %v1099
          %v1182 = vpop.permute.xlu0 %1181
          %1185 = vset.pattern.permute.xlu0 0
          %1186 = vperm.xlu0 %1185, %v1100
          %v1187 = vpop.permute.xlu0 %1186
          %1190 = vset.pattern.permute.xlu0 0
          %1191 = vperm.xlu0 %1190, %v1101
          %v1192 = vpop.permute.xlu0 %1191
          %1195 = vset.pattern.permute.xlu0 0
          %1196 = vperm.xlu0 %1195, %v1102
          %v1197 = vpop.permute.xlu0 %1196
          %1200 = vset.pattern.permute.xlu0 0
          %1201 = vperm.xlu0 %1200, %v1103
          %v1202 = vpop.permute.xlu0 %1201
          %1205 = vset.pattern.permute.xlu0 0
          %1206 = vperm.xlu0 %1205, %v1104
          %v1207 = vpop.permute.xlu0 %1206
          %1210 = vset.pattern.permute.xlu0 0
          %1211 = vperm.xlu0 %1210, %v1105
          %v1212 = vpop.permute.xlu0 %1211
          %1215 = vset.pattern.permute.xlu0 0
          %1216 = vperm.xlu0 %1215, %v1106
          %v1217 = vpop.permute.xlu0 %1216
          %1220 = vset.pattern.permute.xlu0 0
          %1221 = vperm.xlu0 %1220, %v1107
          %v1222 = vpop.permute.xlu0 %1221
          %1225 = vset.pattern.permute.xlu0 0
          %1226 = vperm.xlu0 %1225, %v1108
          %v1227 = vpop.permute.xlu0 %1226
          %v1229 = vmul.f32 %v1061, %v1112
          %v1230 = vmul.f32 %v1062, %v1117
          %v1231 = vmul.f32 %v1063, %v1122
          %v1232 = vmul.f32 %v1064, %v1127
          %v1233 = vmul.f32 %v1065, %v1132
          %v1234 = vmul.f32 %v1066, %v1137
          %v1235 = vmul.f32 %v1067, %v1142
          %v1236 = vmul.f32 %v1068, %v1147
          %v1237 = vmul.f32 %v1069, %v1152
          %v1238 = vmul.f32 %v1070, %v1157
          %v1239 = vmul.f32 %v1071, %v1162
          %v1240 = vmul.f32 %v1072, %v1167
          %v1241 = vmul.f32 %v1073, %v1172
          %v1242 = vmul.f32 %v1074, %v1177
          %v1243 = vmul.f32 %v1075, %v1182
          %v1244 = vmul.f32 %v1076, %v1187
          %v1245 = vmul.f32 %v1077, %v1192
          %v1246 = vmul.f32 %v1078, %v1197
          %v1247 = vmul.f32 %v1079, %v1202
          %v1248 = vmul.f32 %v1080, %v1207
          %v1249 = vmul.f32 %v1081, %v1212
          %v1250 = vmul.f32 %v1082, %v1217
          %v1251 = vmul.f32 %v1083, %v1222
          %v1252 = vmul.f32 %v1084, %v1227
          %v1253 = vpack.c.bf16 %v1230, %v1229
          %v1254 = vpack.c.bf16 %v1232, %v1231
          %v1255 = vpack.c.bf16 %v1234, %v1233
          %v1256 = vpack.c.bf16 %v1236, %v1235
          %v1257 = vpack.c.bf16 %v1238, %v1237
          %v1258 = vpack.c.bf16 %v1240, %v1239
          %v1259 = vpack.c.bf16 %v1242, %v1241
          %v1260 = vpack.c.bf16 %v1244, %v1243
          %v1261 = vpack.c.bf16 %v1246, %v1245
          %v1262 = vpack.c.bf16 %v1248, %v1247
          %v1263 = vpack.c.bf16 %v1250, %v1249
          %v1264 = vpack.c.bf16 %v1252, %v1251
          %s1265 = smul.u32 %s27, 192
          %s1266 = sshra.s32 %s1265, 3
          %s1267 = sand.u32 %s1265, 7
          %s1268 = smul.addr %s1266, 4
          %s1269 = scalar_lea.vmem %s1, %s1268
          %v1270 = vld [vmem:[%s1269] sm:$0xf]
          %v1271 = vld [vmem:[%s1269 + $0x4] sm:$0xf]
          %v1272 = vld [vmem:[%s1269 + $0x8] sm:$0xf]
          %v1273 = vld [vmem:[%s1269 + $0xc] sm:$0xf]
          %v1274 = vld [vmem:[%s1269 + $0x10] sm:$0xf]
          %v1275 = vld [vmem:[%s1269 + $0x14] sm:$0xf]
          %v1276 = vld [vmem:[%s1269 + $0x18] sm:$0xf]
          %v1277 = vld [vmem:[%s1269 + $0x1c] sm:$0xf]
          %v1278 = vld [vmem:[%s1269 + $0x20] sm:$0xf]
          %v1279 = vld [vmem:[%s1269 + $0x24] sm:$0xf]
          %v1280 = vld [vmem:[%s1269 + $0x28] sm:$0xf]
          %v1281 = vld [vmem:[%s1269 + $0x2c] sm:$0xf]
          %v1282 = vld [vmem:[%s1269 + $0x30] sm:$0xf]
          %v1283 = vld [vmem:[%s1269 + $0x34] sm:$0xf]
          %v1284 = vld [vmem:[%s1269 + $0x38] sm:$0xf]
          %v1285 = vld [vmem:[%s1269 + $0x3c] sm:$0xf]
          %v1286 = vld [vmem:[%s1269 + $0x40] sm:$0xf]
          %v1287 = vld [vmem:[%s1269 + $0x44] sm:$0xf]
          %v1288 = vld [vmem:[%s1269 + $0x48] sm:$0xf]
          %v1289 = vld [vmem:[%s1269 + $0x4c] sm:$0xf]
          %v1290 = vld [vmem:[%s1269 + $0x50] sm:$0xf]
          %v1291 = vld [vmem:[%s1269 + $0x54] sm:$0xf]
          %v1292 = vld [vmem:[%s1269 + $0x58] sm:$0xf]
          %v1293 = vld [vmem:[%s1269 + $0x5c] sm:$0xf]
          %v1294 = vld [vmem:[%s3] sm:$0xf]
          %v1295 = vld [vmem:[%s3 + $0x4] sm:$0xf]
          %v1296 = vld [vmem:[%s3 + $0x8] sm:$0xf]
          %v1297 = vld [vmem:[%s3 + $0xc] sm:$0xf]
          %v1298 = vld [vmem:[%s3 + $0x10] sm:$0xf]
          %v1299 = vld [vmem:[%s3 + $0x14] sm:$0xf]
          %v1300 = vld [vmem:[%s3 + $0x18] sm:$0xf]
          %v1301 = vld [vmem:[%s3 + $0x1c] sm:$0xf]
          %v1302 = vld [vmem:[%s3 + $0x20] sm:$0xf]
          %v1303 = vld [vmem:[%s3 + $0x24] sm:$0xf]
          %v1304 = vld [vmem:[%s3 + $0x28] sm:$0xf]
          %v1305 = vld [vmem:[%s3 + $0x2c] sm:$0xf]
          %v1306 = vld [vmem:[%s3 + $0x30] sm:$0xf]
          %v1307 = vld [vmem:[%s3 + $0x34] sm:$0xf]
          %v1308 = vld [vmem:[%s3 + $0x38] sm:$0xf]
          %v1309 = vld [vmem:[%s3 + $0x3c] sm:$0xf]
          %v1310 = vld [vmem:[%s4] sm:$0xf]
          %v1311 = vld [vmem:[%s4 + $0x4] sm:$0xf]
          %v1312 = vld [vmem:[%s4 + $0x8] sm:$0xf]
          %v1313 = vld [vmem:[%s4 + $0xc] sm:$0xf]
          %v1314 = vld [vmem:[%s4 + $0x10] sm:$0xf]
          %v1315 = vld [vmem:[%s4 + $0x14] sm:$0xf]
          %v1316 = vld [vmem:[%s4 + $0x18] sm:$0xf]
          %v1317 = vld [vmem:[%s4 + $0x1c] sm:$0xf]
          %v1318 = vld [vmem:[%s4 + $0x20] sm:$0xf]
          %v1319 = vld [vmem:[%s4 + $0x24] sm:$0xf]
          %v1320 = vld [vmem:[%s4 + $0x28] sm:$0xf]
          %v1321 = vld [vmem:[%s4 + $0x2c] sm:$0xf]
          %v1322 = vld [vmem:[%s4 + $0x30] sm:$0xf]
          %v1323 = vld [vmem:[%s4 + $0x34] sm:$0xf]
          %v1324 = vld [vmem:[%s4 + $0x38] sm:$0xf]
          %v1325 = vld [vmem:[%s4 + $0x3c] sm:$0xf]
          %v1350 = vunpack.c.l.b16 %v1270
          %v1351 = vunpack.c.l.b16 %v1271
          %v1352 = vunpack.c.l.b16 %v1272
          %v1353 = vunpack.c.l.b16 %v1273
          %v1354 = vunpack.c.l.b16 %v1274
          %v1355 = vunpack.c.l.b16 %v1275
          %v1356 = vunpack.c.l.b16 %v1276
          %v1357 = vunpack.c.l.b16 %v1277
          %v1358 = vunpack.c.l.b16 %v1278
          %v1359 = vunpack.c.l.b16 %v1279
          %v1360 = vunpack.c.l.b16 %v1280
          %v1361 = vunpack.c.l.b16 %v1281
          %v1362 = vunpack.c.l.b16 %v1282
          %v1363 = vunpack.c.l.b16 %v1283
          %v1364 = vunpack.c.l.b16 %v1284
          %v1365 = vunpack.c.l.b16 %v1285
          %v1366 = vunpack.c.l.b16 %v1286
          %v1367 = vunpack.c.l.b16 %v1287
          %v1368 = vunpack.c.l.b16 %v1288
          %v1369 = vunpack.c.l.b16 %v1289
          %v1370 = vunpack.c.l.b16 %v1290
          %v1371 = vunpack.c.l.b16 %v1291
          %v1372 = vunpack.c.l.b16 %v1292
          %v1373 = vunpack.c.l.b16 %v1293
          %v1374 = vpack.c.b16 %v1351, %v1350
          %v1375 = vpack.c.b16 %v1353, %v1352
          %v1376 = vpack.c.b16 %v1355, %v1354
          %v1377 = vpack.c.b16 %v1357, %v1356
          %v1378 = vpack.c.b16 %v1359, %v1358
          %v1379 = vpack.c.b16 %v1361, %v1360
          %v1380 = vpack.c.b16 %v1363, %v1362
          %v1381 = vpack.c.b16 %v1365, %v1364
          %v1382 = vpack.c.b16 %v1367, %v1366
          %v1383 = vpack.c.b16 %v1369, %v1368
          %v1384 = vpack.c.b16 %v1371, %v1370
          %v1385 = vpack.c.b16 %v1373, %v1372
          %v1414 = vunpack.c.l.b16 %v1310
          %v1415 = vunpack.c.l.b16 %v1311
          %v1416 = vunpack.c.l.b16 %v1312
          %v1417 = vunpack.c.l.b16 %v1313
          %v1418 = vunpack.c.l.b16 %v1314
          %v1419 = vunpack.c.l.b16 %v1315
          %v1420 = vunpack.c.l.b16 %v1316
          %v1421 = vunpack.c.l.b16 %v1317
          %v1422 = vunpack.c.l.b16 %v1318
          %v1423 = vunpack.c.l.b16 %v1319
          %v1424 = vunpack.c.l.b16 %v1320
          %v1425 = vunpack.c.l.b16 %v1321
          %v1426 = vunpack.c.l.b16 %v1322
          %v1427 = vunpack.c.l.b16 %v1323
          %v1428 = vunpack.c.l.b16 %v1324
          %v1429 = vunpack.c.l.b16 %v1325
          %v1430 = vpack.c.b16 %v1415, %v1414
          %v1431 = vpack.c.b16 %v1417, %v1416
          %v1432 = vpack.c.b16 %v1419, %v1418
          %v1433 = vpack.c.b16 %v1421, %v1420
          %v1434 = vpack.c.b16 %v1423, %v1422
          %v1435 = vpack.c.b16 %v1425, %v1424
          %v1436 = vpack.c.b16 %v1427, %v1426
          %v1437 = vpack.c.b16 %v1429, %v1428
          %1446 = vmatpush.bf16.msra.mxu0 %v1437
          %1447 = vmatpush.bf16.msra.mxu0 %v1436
          %1448 = vmatpush.bf16.msra.mxu0 %v1435
          %1449 = vmatpush.bf16.msra.mxu0 %v1434
          %1450 = vmatpush.bf16.msra.mxu0 %v1433
          %1451 = vmatpush.bf16.msra.mxu0 %v1432
          %1452 = vmatpush.bf16.msra.mxu0 %v1431
          %1453 = vmatpush.bf16.msra.mxu0 %v1430
          %1454 = vmatmul.bf16.gmra.mxu0 %v1374
          %v1455 = vpop.f32.mrf.mxu0
          %v1456 = vadd.f32 0.0, %v1455
          %v1457 = vpop.f32.mrf.mxu0
          %v1458 = vadd.f32 0.0, %v1457
          %1459 = vmatmul.bf16.gmra.mxu0 %v1375
          %v1460 = vpop.f32.mrf.mxu0
          %v1461 = vadd.f32 0.0, %v1460
          %v1462 = vpop.f32.mrf.mxu0
          %v1463 = vadd.f32 0.0, %v1462
          %1464 = vmatmul.bf16.gmra.mxu0 %v1376
          %v1465 = vpop.f32.mrf.mxu0
          %v1466 = vadd.f32 0.0, %v1465
          %v1467 = vpop.f32.mrf.mxu0
          %v1468 = vadd.f32 0.0, %v1467
          %1469 = vmatmul.bf16.gmra.mxu0 %v1377
          %v1470 = vpop.f32.mrf.mxu0
          %v1471 = vadd.f32 0.0, %v1470
          %v1472 = vpop.f32.mrf.mxu0
          %v1473 = vadd.f32 0.0, %v1472
          %1474 = vmatmul.bf16.gmra.mxu0 %v1378
          %v1475 = vpop.f32.mrf.mxu0
          %v1476 = vadd.f32 0.0, %v1475
          %v1477 = vpop.f32.mrf.mxu0
          %v1478 = vadd.f32 0.0, %v1477
          %1479 = vmatmul.bf16.gmra.mxu0 %v1379
          %v1480 = vpop.f32.mrf.mxu0
          %v1481 = vadd.f32 0.0, %v1480
          %v1482 = vpop.f32.mrf.mxu0
          %v1483 = vadd.f32 0.0, %v1482
          %1484 = vmatmul.bf16.gmra.mxu0 %v1380
          %v1485 = vpop.f32.mrf.mxu0
          %v1486 = vadd.f32 0.0, %v1485
          %v1487 = vpop.f32.mrf.mxu0
          %v1488 = vadd.f32 0.0, %v1487
          %1489 = vmatmul.bf16.gmra.mxu0 %v1381
          %v1490 = vpop.f32.mrf.mxu0
          %v1491 = vadd.f32 0.0, %v1490
          %v1492 = vpop.f32.mrf.mxu0
          %v1493 = vadd.f32 0.0, %v1492
          %1494 = vmatmul.bf16.gmra.mxu0 %v1382
          %v1495 = vpop.f32.mrf.mxu0
          %v1496 = vadd.f32 0.0, %v1495
          %v1497 = vpop.f32.mrf.mxu0
          %v1498 = vadd.f32 0.0, %v1497
          %1499 = vmatmul.bf16.gmra.mxu0 %v1383
          %v1500 = vpop.f32.mrf.mxu0
          %v1501 = vadd.f32 0.0, %v1500
          %v1502 = vpop.f32.mrf.mxu0
          %v1503 = vadd.f32 0.0, %v1502
          %1504 = vmatmul.bf16.gmra.mxu0 %v1384
          %v1505 = vpop.f32.mrf.mxu0
          %v1506 = vadd.f32 0.0, %v1505
          %v1507 = vpop.f32.mrf.mxu0
          %v1508 = vadd.f32 0.0, %v1507
          %1509 = vmatmul.bf16.gmra.mxu0 %v1385
          %v1510 = vpop.f32.mrf.mxu0
          %v1511 = vadd.f32 0.0, %v1510
          %v1512 = vpop.f32.mrf.mxu0
          %v1513 = vadd.f32 0.0, %v1512
          %1514 = vdwg.mxu0
          %v1531 = vunpack.c.l.b16 %v1294
          %v1532 = vunpack.c.l.b16 %v1295
          %v1533 = vunpack.c.l.b16 %v1296
          %v1534 = vunpack.c.l.b16 %v1297
          %v1535 = vunpack.c.l.b16 %v1298
          %v1536 = vunpack.c.l.b16 %v1299
          %v1537 = vunpack.c.l.b16 %v1300
          %v1538 = vunpack.c.l.b16 %v1301
          %v1539 = vunpack.c.l.b16 %v1302
          %v1540 = vunpack.c.l.b16 %v1303
          %v1541 = vunpack.c.l.b16 %v1304
          %v1542 = vunpack.c.l.b16 %v1305
          %v1543 = vunpack.c.l.b16 %v1306
          %v1544 = vunpack.c.l.b16 %v1307
          %v1545 = vunpack.c.l.b16 %v1308
          %v1546 = vunpack.c.l.b16 %v1309
          %v1547 = vpack.c.b16 %v1532, %v1531
          %v1548 = vpack.c.b16 %v1534, %v1533
          %v1549 = vpack.c.b16 %v1536, %v1535
          %v1550 = vpack.c.b16 %v1538, %v1537
          %v1551 = vpack.c.b16 %v1540, %v1539
          %v1552 = vpack.c.b16 %v1542, %v1541
          %v1553 = vpack.c.b16 %v1544, %v1543
          %v1554 = vpack.c.b16 %v1546, %v1545
          %1563 = vmatpush.bf16.msra.mxu0 %v1554
          %1564 = vmatpush.bf16.msra.mxu0 %v1553
          %1565 = vmatpush.bf16.msra.mxu0 %v1552
          %1566 = vmatpush.bf16.msra.mxu0 %v1551
          %1567 = vmatpush.bf16.msra.mxu0 %v1550
          %1568 = vmatpush.bf16.msra.mxu0 %v1549
          %1569 = vmatpush.bf16.msra.mxu0 %v1548
          %1570 = vmatpush.bf16.msra.mxu0 %v1547
          %1571 = vmatmul.bf16.gmra.mxu0 %v1253
          %v1572 = vpop.f32.mrf.mxu0
          %v1573 = vadd.f32 %v1456, %v1572
          %v1574 = vpop.f32.mrf.mxu0
          %v1575 = vadd.f32 %v1458, %v1574
          %1576 = vmatmul.bf16.gmra.mxu0 %v1254
          %v1577 = vpop.f32.mrf.mxu0
          %v1578 = vadd.f32 %v1461, %v1577
          %v1579 = vpop.f32.mrf.mxu0
          %v1580 = vadd.f32 %v1463, %v1579
          %1581 = vmatmul.bf16.gmra.mxu0 %v1255
          %v1582 = vpop.f32.mrf.mxu0
          %v1583 = vadd.f32 %v1466, %v1582
          %v1584 = vpop.f32.mrf.mxu0
          %v1585 = vadd.f32 %v1468, %v1584
          %1586 = vmatmul.bf16.gmra.mxu0 %v1256
          %v1587 = vpop.f32.mrf.mxu0
          %v1588 = vadd.f32 %v1471, %v1587
          %v1589 = vpop.f32.mrf.mxu0
          %v1590 = vadd.f32 %v1473, %v1589
          %1591 = vmatmul.bf16.gmra.mxu0 %v1257
          %v1592 = vpop.f32.mrf.mxu0
          %v1593 = vadd.f32 %v1476, %v1592
          %v1594 = vpop.f32.mrf.mxu0
          %v1595 = vadd.f32 %v1478, %v1594
          %1596 = vmatmul.bf16.gmra.mxu0 %v1258
          %v1597 = vpop.f32.mrf.mxu0
          %v1598 = vadd.f32 %v1481, %v1597
          %v1599 = vpop.f32.mrf.mxu0
          %v1600 = vadd.f32 %v1483, %v1599
          %1601 = vmatmul.bf16.gmra.mxu0 %v1259
          %v1602 = vpop.f32.mrf.mxu0
          %v1603 = vadd.f32 %v1486, %v1602
          %v1604 = vpop.f32.mrf.mxu0
          %v1605 = vadd.f32 %v1488, %v1604
          %1606 = vmatmul.bf16.gmra.mxu0 %v1260
          %v1607 = vpop.f32.mrf.mxu0
          %v1608 = vadd.f32 %v1491, %v1607
          %v1609 = vpop.f32.mrf.mxu0
          %v1610 = vadd.f32 %v1493, %v1609
          %1611 = vmatmul.bf16.gmra.mxu0 %v1261
          %v1612 = vpop.f32.mrf.mxu0
          %v1613 = vadd.f32 %v1496, %v1612
          %v1614 = vpop.f32.mrf.mxu0
          %v1615 = vadd.f32 %v1498, %v1614
          %1616 = vmatmul.bf16.gmra.mxu0 %v1262
          %v1617 = vpop.f32.mrf.mxu0
          %v1618 = vadd.f32 %v1501, %v1617
          %v1619 = vpop.f32.mrf.mxu0
          %v1620 = vadd.f32 %v1503, %v1619
          %1621 = vmatmul.bf16.gmra.mxu0 %v1263
          %v1622 = vpop.f32.mrf.mxu0
          %v1623 = vadd.f32 %v1506, %v1622
          %v1624 = vpop.f32.mrf.mxu0
          %v1625 = vadd.f32 %v1508, %v1624
          %1626 = vmatmul.bf16.gmra.mxu0 %v1264
          %v1627 = vpop.f32.mrf.mxu0
          %v1628 = vadd.f32 %v1511, %v1627
          %v1629 = vpop.f32.mrf.mxu0
          %v1630 = vadd.f32 %v1513, %v1629
          %1631 = vdwg.mxu0
          %v1632 = vld [vmem:[%s5] sm:$0x1]
          %v1634 = vperm.slane %v1632, 0
          %v1636 = vadd.f32 %v1573, %v1634
          %v1637 = vadd.f32 %v1575, %v1634
          %v1638 = vadd.f32 %v1578, %v1634
          %v1639 = vadd.f32 %v1580, %v1634
          %v1640 = vadd.f32 %v1583, %v1634
          %v1641 = vadd.f32 %v1585, %v1634
          %v1642 = vadd.f32 %v1588, %v1634
          %v1643 = vadd.f32 %v1590, %v1634
          %v1644 = vadd.f32 %v1593, %v1634
          %v1645 = vadd.f32 %v1595, %v1634
          %v1646 = vadd.f32 %v1598, %v1634
          %v1647 = vadd.f32 %v1600, %v1634
          %v1648 = vadd.f32 %v1603, %v1634
          %v1649 = vadd.f32 %v1605, %v1634
          %v1650 = vadd.f32 %v1608, %v1634
          %v1651 = vadd.f32 %v1610, %v1634
          %v1652 = vadd.f32 %v1613, %v1634
          %v1653 = vadd.f32 %v1615, %v1634
          %v1654 = vadd.f32 %v1618, %v1634
          %v1655 = vadd.f32 %v1620, %v1634
          %v1656 = vadd.f32 %v1623, %v1634
          %v1657 = vadd.f32 %v1625, %v1634
          %v1658 = vadd.f32 %v1628, %v1634
          %v1659 = vadd.f32 %v1630, %v1634
          %v1660 = vmax.f32 %v1636, 0.0
          %v1661 = vmax.f32 %v1637, 0.0
          %v1662 = vmax.f32 %v1638, 0.0
          %v1663 = vmax.f32 %v1639, 0.0
          %v1664 = vmax.f32 %v1640, 0.0
          %v1665 = vmax.f32 %v1641, 0.0
          %v1666 = vmax.f32 %v1642, 0.0
          %v1667 = vmax.f32 %v1643, 0.0
          %v1668 = vmax.f32 %v1644, 0.0
          %v1669 = vmax.f32 %v1645, 0.0
          %v1670 = vmax.f32 %v1646, 0.0
          %v1671 = vmax.f32 %v1647, 0.0
          %v1672 = vmax.f32 %v1648, 0.0
          %v1673 = vmax.f32 %v1649, 0.0
          %v1674 = vmax.f32 %v1650, 0.0
          %v1675 = vmax.f32 %v1651, 0.0
          %v1676 = vmax.f32 %v1652, 0.0
          %v1677 = vmax.f32 %v1653, 0.0
          %v1678 = vmax.f32 %v1654, 0.0
          %v1679 = vmax.f32 %v1655, 0.0
          %v1680 = vmax.f32 %v1656, 0.0
          %v1681 = vmax.f32 %v1657, 0.0
          %v1682 = vmax.f32 %v1658, 0.0
          %v1683 = vmax.f32 %v1659, 0.0
          %v1684 = vpack.c.bf16 %v1660, %v1660
          %v1685 = vpack.c.bf16 %v1661, %v1661
          %v1686 = vpack.c.bf16 %v1662, %v1662
          %v1687 = vpack.c.bf16 %v1663, %v1663
          %v1688 = vpack.c.bf16 %v1664, %v1664
          %v1689 = vpack.c.bf16 %v1665, %v1665
          %v1690 = vpack.c.bf16 %v1666, %v1666
          %v1691 = vpack.c.bf16 %v1667, %v1667
          %v1692 = vpack.c.bf16 %v1668, %v1668
          %v1693 = vpack.c.bf16 %v1669, %v1669
          %v1694 = vpack.c.bf16 %v1670, %v1670
          %v1695 = vpack.c.bf16 %v1671, %v1671
          %v1696 = vpack.c.bf16 %v1672, %v1672
          %v1697 = vpack.c.bf16 %v1673, %v1673
          %v1698 = vpack.c.bf16 %v1674, %v1674
          %v1699 = vpack.c.bf16 %v1675, %v1675
          %v1700 = vpack.c.bf16 %v1676, %v1676
          %v1701 = vpack.c.bf16 %v1677, %v1677
          %v1702 = vpack.c.bf16 %v1678, %v1678
          %v1703 = vpack.c.bf16 %v1679, %v1679
          %v1704 = vpack.c.bf16 %v1680, %v1680
          %v1705 = vpack.c.bf16 %v1681, %v1681
          %v1706 = vpack.c.bf16 %v1682, %v1682
          %v1707 = vpack.c.bf16 %v1683, %v1683
          %1708 = vst [vmem:[%s304] sm:$0xf] %v1684
          %1709 = vst [vmem:[%s304 + $0x4] sm:$0xf] %v1685
          %1710 = vst [vmem:[%s304 + $0x8] sm:$0xf] %v1686
          %1711 = vst [vmem:[%s304 + $0xc] sm:$0xf] %v1687
          %1712 = vst [vmem:[%s304 + $0x10] sm:$0xf] %v1688
          %1713 = vst [vmem:[%s304 + $0x14] sm:$0xf] %v1689
          %1714 = vst [vmem:[%s304 + $0x18] sm:$0xf] %v1690
          %1715 = vst [vmem:[%s304 + $0x1c] sm:$0xf] %v1691
          %1716 = vst [vmem:[%s304 + $0x20] sm:$0xf] %v1692
          %1717 = vst [vmem:[%s304 + $0x24] sm:$0xf] %v1693
          %1718 = vst [vmem:[%s304 + $0x28] sm:$0xf] %v1694
          %1719 = vst [vmem:[%s304 + $0x2c] sm:$0xf] %v1695
          %1720 = vst [vmem:[%s304 + $0x30] sm:$0xf] %v1696
          %1721 = vst [vmem:[%s304 + $0x34] sm:$0xf] %v1697
          %1722 = vst [vmem:[%s304 + $0x38] sm:$0xf] %v1698
          %1723 = vst [vmem:[%s304 + $0x3c] sm:$0xf] %v1699
          %1724 = vst [vmem:[%s304 + $0x40] sm:$0xf] %v1700
          %1725 = vst [vmem:[%s304 + $0x44] sm:$0xf] %v1701
          %1726 = vst [vmem:[%s304 + $0x48] sm:$0xf] %v1702
          %1727 = vst [vmem:[%s304 + $0x4c] sm:$0xf] %v1703
          %1728 = vst [vmem:[%s304 + $0x50] sm:$0xf] %v1704
          %1729 = vst [vmem:[%s304 + $0x54] sm:$0xf] %v1705
          %1730 = vst [vmem:[%s304 + $0x58] sm:$0xf] %v1706
          %1731 = vst [vmem:[%s304 + $0x5c] sm:$0xf] %v1707
        $region56: #{tpu_custom_call.1} parent=43 // pred_fallthru
          _
        %s1732 = sand.u32 %s181, 1
        %s1733 = scalar_lea.sflag [#allocation5], %s1732
        %s1734 = sand.u32 %s181, 1
        %s1735 = smul.addr %s1734, 96
        %s1736 = scalar_lea.vmem [#allocation6], %s1735
        // Predicated region
        $region57: #{tpu_custom_call.1} parent=43 // pred_check
          %p1737 = pneg %p191
        $region58: #{tpu_custom_call.1} parent=43 // pred_check_branch
          %1739 = sbr.rel (%p1737) target = $region60
        $region59: #{tpu_custom_call.1} parent=43 // pred_region
          %s1740 = smul.u32 24, %s27
          %1742 = vsyncadd %s1733, 0
          %s1743 = smul.addr %s1740, 4
          %s1744 = scalar_lea.hbm %s6, %s1743
          %s1745 = sshll.u32 %s1736, 4
          %s1746 = int_to_ptr.vmem [resolvable:$true] %s1745
          %s1747 = sshll.u32 %s1744, 4
          %s1748 = int_to_ptr.hbm [resolvable:$true] %s1747
          %1753 = dma.vmem_to_hbm [thread:$0]  %s1746, 1536, %s1748, %s1733, 64, 64, 4
        $region60: #{tpu_custom_call.1} parent=43 // pred_fallthru
          _
      $region44: #{tpu_custom_call.1} parent=5 // pred_fallthru
        _
      %p1754 = scmp.le.s32.totalorder 2, %s18
      // Predicated region
      $region61: #{tpu_custom_call.1} parent=5 // pred_check
        %p1755 = pneg %p1754
      $region62: #{tpu_custom_call.1} parent=5 // pred_check_branch
        %1757 = sbr.rel (%p1755) target = $region64
      $region63: #{tpu_custom_call.1} parent=5 // pred_region
        %s1758 = ssub.s32 %s18, 2
        // Predicated region
        $region65: #{tpu_custom_call.1} parent=63 // pred_check
          %p1759 = pneg %p197
        $region66: #{tpu_custom_call.1} parent=63 // pred_check_branch
          %1761 = sbr.rel (%p1759) target = $region68
        $region67: #{tpu_custom_call.1} parent=63 // pred_region
          %s1762 = sand.u32 %s182, 1
          %s1763 = scalar_lea.sflag [#allocation5], %s1762
          %s1764 = sand.u32 %s182, 1
          %s1765 = smul.addr %s1764, 96
          %s1766 = scalar_lea.vmem [#allocation6], %s1765
          %1768 = dma.done %s1763, 1536
        $region68: #{tpu_custom_call.1} parent=63 // pred_fallthru
          _
      $region64: #{tpu_custom_call.1} parent=5 // pred_fallthru
        _
    $region6: #{tpu_custom_call.1} parent=1 // loop_footer
      %s22 = sadd.s32 1, %s18
    $region7: #{tpu_custom_call.1} parent=1 // loop_footer_branch
      %17 = sbr.rel target = $region3
    $region8: #{tpu_custom_call.1} parent=1 // loop_exit
      _
    %1769 = vsyncpa [#allocation4], 1
    %s1770 = scalar_lea.sflag [#allocation4], 1
    %1771 = vsyncpa %s1770, 1
    %1772 = vsyncpa [#allocation5], 1
    %s1773 = scalar_lea.sflag [#allocation5], 1
    %1774 = vsyncpa %s1773, 1

</llo_original>
